<compile_context>
chip_gen: v5e
topology: v5e:2x2
jax: 0.10.0
libtpu: 0.0.40
codegen_flags: <defaults>
</compile_context>

<pallas_src>
import jax
import jax.numpy as jnp
import numpy as np
from jax.experimental import pallas as pl
from jax.experimental.pallas import tpu as pltpu

EPS = 1e-5


def _conv3x3_bn_relu(pad_ref, inp, wmat, gamma, beta, H2, W2):
    """3x3 'same' conv (single im2col matmul) + train-mode BN + ReLU.

    inp:   (N, H2, W2, C)  f32 value
    wmat:  (9*C, Cout)     f32 value, tap-major order k = dy*3 + dx
    gamma, beta: (1, Cout) f32 values
    returns (N*H2*W2, Cout) f32 value
    """
    N = inp.shape[0]
    C = inp.shape[-1]
    M = N * H2 * W2

    # Fill padded scratch: interior store + border-only zeroing (no full zero-fill pass).
    pad_ref[:, 1:H2 + 1, 1:W2 + 1, :] = inp
    zrow = jnp.zeros((N, 1, W2 + 2, C), jnp.float32)
    pad_ref[:, 0:1, :, :] = zrow
    pad_ref[:, H2 + 1:H2 + 2, :, :] = zrow
    zcol = jnp.zeros((N, H2 + 2, 1, C), jnp.float32)
    pad_ref[:, :, 0:1, :] = zcol
    pad_ref[:, :, W2 + 1:W2 + 2, :] = zcol

    # im2col: 9 shifted views concatenated on the lane axis -> one MXU matmul (K = 9*C).
    taps = [pad_ref[:, dy:dy + H2, dx:dx + W2, :].reshape(M, C)
            for dy in range(3) for dx in range(3)]
    patches = jnp.concatenate(taps, axis=-1)                            # (M, 9*C)
    acc = jnp.dot(patches, wmat, preferred_element_type=jnp.float32)    # (M, Cout)

    # BatchNorm (training mode), single pass over acc. Conv bias omitted: it is
    # mathematically cancelled by the mean subtraction below.
    inv_m = 1.0 / M
    mu = jnp.sum(acc, axis=0, keepdims=True) * inv_m                    # (1, Cout)
    ex2 = jnp.sum(acc * acc, axis=0, keepdims=True) * inv_m
    var = ex2 - mu * mu
    scale = gamma * jax.lax.rsqrt(var + EPS)                            # (1, Cout)
    shift = beta - mu * scale
    return jnp.maximum(acc * scale + shift, 0.0)                        # (M, Cout)


def down_kernel(x_ref, w1_ref, g1_ref, be1_ref, w2_ref, g2_ref, be2_ref,
                out_ref, pada_ref, padb_ref):
    N, H2, _, W2, C2 = x_ref.shape
    Cin = C2 // 2
    Cmid = w1_ref.shape[-1]
    Cout = w2_ref.shape[-1]

    # 2x2 max-pool (stride 2) in-kernel from the single reshaped input.
    xv = x_ref[...]                                         # (N, H2, 2, W2, 2*Cin)
    rowmax = jnp.maximum(xv[:, :, 0], xv[:, :, 1])          # (N, H2, W2, 2*Cin)
    pooled = jnp.maximum(rowmax[..., :Cin], rowmax[..., Cin:])   # (N, H2, W2, Cin)

    h = _conv3x3_bn_relu(pada_ref, pooled, w1_ref[...], g1_ref[...], be1_ref[...], H2, W2)
    h = h.reshape(N, H2, W2, Cmid)
    y = _conv3x3_bn_relu(padb_ref, h, w2_ref[...], g2_ref[...], be2_ref[...], H2, W2)
    out_ref[...] = y.reshape(N, H2, W2, Cout)


def down_forward(x_nchw, params):
    """x_nchw: (N, Cin, H, W) float32 -> (N, Cout, H//2, W//2) float32."""
    (w1, b1, g1, be1, w2, b2, g2, be2) = params
    del b1, b2  # conv bias is exactly cancelled by train-mode BN mean subtraction
    N, Cin, H, W = x_nchw.shape
    H2, W2 = H // 2, W // 2
    Cmid = w1.shape[-1]
    Cout = w2.shape[-1]

    x = jnp.transpose(x_nchw, (0, 2, 3, 1)).astype(jnp.float32)     # NHWC
    x5 = x.reshape(N, H2, 2, W2, 2 * Cin)                           # pure reshape, no copy
    w1m = w1.reshape(9 * Cin, Cmid).astype(jnp.float32)             # im2col weight (9*Cin, Cmid)
    w2m = w2.reshape(9 * Cmid, Cout).astype(jnp.float32)

    # TODO(synk): for production-scale shapes (e.g. v7x 64 MiB VMEM / dual TC), tile over
    # N/H2 with a grid + two-phase BN (sum/sumsq stats pass, then normalize pass) and mark
    # the batch/spatial axis "parallel"; optionally cast im2col operands to bf16 on v6e/v7x.
    vmem = pl.BlockSpec(memory_space=pltpu.MemorySpace.VMEM)
    out = pl.pallas_call(
        down_kernel,
        out_shape=jax.ShapeDtypeStruct((N, H2, W2, Cout), jnp.float32),
        in_specs=[vmem] * 7,
        out_specs=vmem,
        scratch_shapes=[
            pltpu.VMEM((N, H2 + 2, W2 + 2, Cin), jnp.float32),   # padded conv1 input
            pltpu.VMEM((N, H2 + 2, W2 + 2, Cmid), jnp.float32),  # padded conv2 input
        ],
        compiler_params=pltpu.CompilerParams(vmem_limit_bytes=64 * 1024 * 1024),
    )(x5, w1m, g1, be1, w2m, g2, be2)
    return jnp.transpose(out, (0, 3, 1, 2))                         # back to NCHW


def init_params(key, cin, cout):
    """Deterministic synthetic parameters (Cmid == Cout, as in DoubleConv default)."""
    cmid = cout
    ks = jax.random.split(key, 8)
    w1 = jax.random.normal(ks[0], (9, cin, cmid), jnp.float32) * 0.2   # (kh*kw, Cin, Cmid)
    b1 = jax.random.normal(ks[1], (1, cmid), jnp.float32) * 0.1
    g1 = 1.0 + jax.random.normal(ks[2], (1, cmid), jnp.float32) * 0.1
    be1 = jax.random.normal(ks[3], (1, cmid), jnp.float32) * 0.1
    w2 = jax.random.normal(ks[4], (9, cmid, cout), jnp.float32) * 0.2
    b2 = jax.random.normal(ks[5], (1, cout), jnp.float32) * 0.1
    g2 = 1.0 + jax.random.normal(ks[6], (1, cout), jnp.float32) * 0.1
    be2 = jax.random.normal(ks[7], (1, cout), jnp.float32) * 0.1
    return (w1, b1, g1, be1, w2, b2, g2, be2)


def reference_down(x_nchw, params):
    """Pure-JAX reference (same semantics as the PyTorch module in train mode)."""
    (w1, b1, g1, be1, w2, b2, g2, be2) = params
    x = jnp.transpose(x_nchw, (0, 2, 3, 1))
    N, H, W, C = x.shape
    p = jnp.max(x.reshape(N, H // 2, 2, W // 2, 2, C), axis=(2, 4))

    def conv_bn_relu(inp, w9, b, g, be):
        w = w9.reshape(3, 3, inp.shape[-1], -1)
        y = jax.lax.conv_general_dilated(
            inp, w, window_strides=(1, 1), padding="SAME",
            dimension_numbers=("NHWC", "HWIO", "NHWC")) + b
        mu = jnp.mean(y, axis=(0, 1, 2), keepdims=True)
        var = jnp.mean((y - mu) ** 2, axis=(0, 1, 2), keepdims=True)
        y = g * (y - mu) * jax.lax.rsqrt(var + EPS) + be
        return jnp.maximum(y, 0.0)

    h = conv_bn_relu(p, w1, b1, g1, be1)
    h = conv_bn_relu(h, w2, b2, g2, be2)
    return jnp.transpose(h, (0, 3, 1, 2))


if __name__ == "__main__":
    key = jax.random.PRNGKey(0)
    kx, kp = jax.random.split(key)

    N, Cin, H, W = 2, 4, 16, 16
    Cout = 8
    x = jax.random.normal(kx, (N, Cin, H, W), jnp.float32)
    params = init_params(kp, Cin, Cout)

    y = jax.jit(down_forward)(x, params)
    y = jax.block_until_ready(y)
    assert y.shape == (N, Cout, H // 2, W // 2) and y.dtype == jnp.float32

    y_ref = reference_down(x, params)
    np.testing.assert_allclose(np.asarray(y), np.asarray(y_ref), rtol=3e-4, atol=3e-4)
    print("KERNEL_OK")
</pallas_src>

<mosaic_0001>
module attributes {stable_mosaic.version = 11 : i64} {
  func.func @down_kernel(%arg0: memref<2x8x2x8x8xf32, #tpu.memory_space<vmem>>, %arg1: memref<36x8xf32, #tpu.memory_space<vmem>>, %arg2: memref<1x8xf32, #tpu.memory_space<vmem>>, %arg3: memref<1x8xf32, #tpu.memory_space<vmem>>, %arg4: memref<72x8xf32, #tpu.memory_space<vmem>>, %arg5: memref<1x8xf32, #tpu.memory_space<vmem>>, %arg6: memref<1x8xf32, #tpu.memory_space<vmem>>, %arg7: memref<2x8x8x8xf32, #tpu.memory_space<vmem>>, %arg8: memref<2x10x10x4xf32, #tpu.memory_space<vmem>>, %arg9: memref<2x10x10x8xf32, #tpu.memory_space<vmem>>) attributes {dimension_semantics = [], scalar_prefetch = 0 : i64, scratch_operands = 2 : i64, tpu.core_type = #tpu.core_type<tc>} {
    %c0 = arith.constant 0 : index
    %c0_0 = arith.constant 0 : index
    %c0_1 = arith.constant 0 : index
    %c0_2 = arith.constant 0 : index
    %c0_3 = arith.constant 0 : index
    %0 = vector.load %arg0[%c0, %c0_0, %c0_1, %c0_2, %c0_3] : memref<2x8x2x8x8xf32, #tpu.memory_space<vmem>>, vector<2x8x2x8x8xf32>
    %1 = vector.extract_strided_slice %0 {offsets = [0, 0, 0, 0, 0], sizes = [2, 8, 1, 8, 8], strides = [1, 1, 1, 1, 1]} : vector<2x8x2x8x8xf32> to vector<2x8x1x8x8xf32>
    %2 = vector.shape_cast %1 : vector<2x8x1x8x8xf32> to vector<2x8x8x8xf32>
    %3 = vector.extract_strided_slice %0 {offsets = [0, 0, 1, 0, 0], sizes = [2, 8, 1, 8, 8], strides = [1, 1, 1, 1, 1]} : vector<2x8x2x8x8xf32> to vector<2x8x1x8x8xf32>
    %4 = vector.shape_cast %3 : vector<2x8x1x8x8xf32> to vector<2x8x8x8xf32>
    %5 = arith.maximumf %2, %4 : vector<2x8x8x8xf32>
    %6 = vector.extract_strided_slice %5 {offsets = [0, 0, 0, 0], sizes = [2, 8, 8, 4], strides = [1, 1, 1, 1]} : vector<2x8x8x8xf32> to vector<2x8x8x4xf32>
    %7 = vector.extract_strided_slice %5 {offsets = [0, 0, 0, 4], sizes = [2, 8, 8, 4], strides = [1, 1, 1, 1]} : vector<2x8x8x8xf32> to vector<2x8x8x4xf32>
    %8 = arith.maximumf %6, %7 : vector<2x8x8x4xf32>
    %c0_4 = arith.constant 0 : index
    %c0_5 = arith.constant 0 : index
    %9 = vector.load %arg1[%c0_4, %c0_5] : memref<36x8xf32, #tpu.memory_space<vmem>>, vector<36x8xf32>
    %c0_6 = arith.constant 0 : index
    %c0_7 = arith.constant 0 : index
    %10 = vector.load %arg2[%c0_6, %c0_7] : memref<1x8xf32, #tpu.memory_space<vmem>>, vector<1x8xf32>
    %c0_8 = arith.constant 0 : index
    %c0_9 = arith.constant 0 : index
    %11 = vector.load %arg3[%c0_8, %c0_9] : memref<1x8xf32, #tpu.memory_space<vmem>>, vector<1x8xf32>
    %c0_10 = arith.constant 0 : index
    %c1 = arith.constant 1 : index
    %c1_11 = arith.constant 1 : index
    %c0_12 = arith.constant 0 : index
    %12 = vector.load %arg8[%c0_10, %c1, %c1_11, %c0_12] : memref<2x10x10x4xf32, #tpu.memory_space<vmem>>, vector<2x8x8x4xf32>
    tpu.vector_store %arg8[%c0_10, %c1, %c1_11, %c0_12], %8 {strides = array<i32>} : memref<2x10x10x4xf32, #tpu.memory_space<vmem>>, vector<2x8x8x4xf32>,
    %cst = arith.constant 0.000000e+00 : f32
    %13 = vector.broadcast %cst : f32 to vector<2x1x10x4xf32>
    %c0_13 = arith.constant 0 : index
    %c0_14 = arith.constant 0 : index
    %c0_15 = arith.constant 0 : index
    %c0_16 = arith.constant 0 : index
    %14 = vector.load %arg8[%c0_13, %c0_14, %c0_15, %c0_16] : memref<2x10x10x4xf32, #tpu.memory_space<vmem>>, vector<2x1x10x4xf32>
    tpu.vector_store %arg8[%c0_13, %c0_14, %c0_15, %c0_16], %13 {strides = array<i32>} : memref<2x10x10x4xf32, #tpu.memory_space<vmem>>, vector<2x1x10x4xf32>,
    %c0_17 = arith.constant 0 : index
    %c9 = arith.constant 9 : index
    %c0_18 = arith.constant 0 : index
    %c0_19 = arith.constant 0 : index
    %15 = vector.load %arg8[%c0_17, %c9, %c0_18, %c0_19] : memref<2x10x10x4xf32, #tpu.memory_space<vmem>>, vector<2x1x10x4xf32>
    tpu.vector_store %arg8[%c0_17, %c9, %c0_18, %c0_19], %13 {strides = array<i32>} : memref<2x10x10x4xf32, #tpu.memory_space<vmem>>, vector<2x1x10x4xf32>,
    %cst_20 = arith.constant 0.000000e+00 : f32
    %16 = vector.broadcast %cst_20 : f32 to vector<2x10x1x4xf32>
    %c0_21 = arith.constant 0 : index
    %c0_22 = arith.constant 0 : index
    %c0_23 = arith.constant 0 : index
    %c0_24 = arith.constant 0 : index
    %17 = vector.load %arg8[%c0_21, %c0_22, %c0_23, %c0_24] : memref<2x10x10x4xf32, #tpu.memory_space<vmem>>, vector<2x10x1x4xf32>
    tpu.vector_store %arg8[%c0_21, %c0_22, %c0_23, %c0_24], %16 {strides = array<i32>} : memref<2x10x10x4xf32, #tpu.memory_space<vmem>>, vector<2x10x1x4xf32>,
    %c0_25 = arith.constant 0 : index
    %c0_26 = arith.constant 0 : index
    %c9_27 = arith.constant 9 : index
    %c0_28 = arith.constant 0 : index
    %18 = vector.load %arg8[%c0_25, %c0_26, %c9_27, %c0_28] : memref<2x10x10x4xf32, #tpu.memory_space<vmem>>, vector<2x10x1x4xf32>
    tpu.vector_store %arg8[%c0_25, %c0_26, %c9_27, %c0_28], %16 {strides = array<i32>} : memref<2x10x10x4xf32, #tpu.memory_space<vmem>>, vector<2x10x1x4xf32>,
    %c0_29 = arith.constant 0 : index
    %c0_30 = arith.constant 0 : index
    %c0_31 = arith.constant 0 : index
    %c0_32 = arith.constant 0 : index
    %19 = vector.load %arg8[%c0_29, %c0_30, %c0_31, %c0_32] : memref<2x10x10x4xf32, #tpu.memory_space<vmem>>, vector<2x8x8x4xf32>
    %20 = vector.shape_cast %19 : vector<2x8x8x4xf32> to vector<128x4xf32>
    %c0_33 = arith.constant 0 : index
    %c0_34 = arith.constant 0 : index
    %c1_35 = arith.constant 1 : index
    %c0_36 = arith.constant 0 : index
    %21 = vector.load %arg8[%c0_33, %c0_34, %c1_35, %c0_36] : memref<2x10x10x4xf32, #tpu.memory_space<vmem>>, vector<2x8x8x4xf32>
    %22 = vector.shape_cast %21 : vector<2x8x8x4xf32> to vector<128x4xf32>
    %c0_37 = arith.constant 0 : index
    %c0_38 = arith.constant 0 : index
    %c2 = arith.constant 2 : index
    %c0_39 = arith.constant 0 : index
    %23 = vector.load %arg8[%c0_37, %c0_38, %c2, %c0_39] : memref<2x10x10x4xf32, #tpu.memory_space<vmem>>, vector<2x8x8x4xf32>
    %24 = vector.shape_cast %23 : vector<2x8x8x4xf32> to vector<128x4xf32>
    %c0_40 = arith.constant 0 : index
    %c1_41 = arith.constant 1 : index
    %c0_42 = arith.constant 0 : index
    %c0_43 = arith.constant 0 : index
    %25 = vector.load %arg8[%c0_40, %c1_41, %c0_42, %c0_43] : memref<2x10x10x4xf32, #tpu.memory_space<vmem>>, vector<2x8x8x4xf32>
    %26 = vector.shape_cast %25 : vector<2x8x8x4xf32> to vector<128x4xf32>
    %c0_44 = arith.constant 0 : index
    %c1_45 = arith.constant 1 : index
    %c1_46 = arith.constant 1 : index
    %c0_47 = arith.constant 0 : index
    %27 = vector.load %arg8[%c0_44, %c1_45, %c1_46, %c0_47] : memref<2x10x10x4xf32, #tpu.memory_space<vmem>>, vector<2x8x8x4xf32>
    %28 = vector.shape_cast %27 : vector<2x8x8x4xf32> to vector<128x4xf32>
    %c0_48 = arith.constant 0 : index
    %c1_49 = arith.constant 1 : index
    %c2_50 = arith.constant 2 : index
    %c0_51 = arith.constant 0 : index
    %29 = vector.load %arg8[%c0_48, %c1_49, %c2_50, %c0_51] : memref<2x10x10x4xf32, #tpu.memory_space<vmem>>, vector<2x8x8x4xf32>
    %30 = vector.shape_cast %29 : vector<2x8x8x4xf32> to vector<128x4xf32>
    %c0_52 = arith.constant 0 : index
    %c2_53 = arith.constant 2 : index
    %c0_54 = arith.constant 0 : index
    %c0_55 = arith.constant 0 : index
    %31 = vector.load %arg8[%c0_52, %c2_53, %c0_54, %c0_55] : memref<2x10x10x4xf32, #tpu.memory_space<vmem>>, vector<2x8x8x4xf32>
    %32 = vector.shape_cast %31 : vector<2x8x8x4xf32> to vector<128x4xf32>
    %c0_56 = arith.constant 0 : index
    %c2_57 = arith.constant 2 : index
    %c1_58 = arith.constant 1 : index
    %c0_59 = arith.constant 0 : index
    %33 = vector.load %arg8[%c0_56, %c2_57, %c1_58, %c0_59] : memref<2x10x10x4xf32, #tpu.memory_space<vmem>>, vector<2x8x8x4xf32>
    %34 = vector.shape_cast %33 : vector<2x8x8x4xf32> to vector<128x4xf32>
    %c0_60 = arith.constant 0 : index
    %c2_61 = arith.constant 2 : index
    %c2_62 = arith.constant 2 : index
    %c0_63 = arith.constant 0 : index
    %35 = vector.load %arg8[%c0_60, %c2_61, %c2_62, %c0_63] : memref<2x10x10x4xf32, #tpu.memory_space<vmem>>, vector<2x8x8x4xf32>
    %36 = vector.shape_cast %35 : vector<2x8x8x4xf32> to vector<128x4xf32>
    %37 = tpu.concatenate %20, %22, %24, %26, %28, %30, %32, %34, %36 in 1 : vector<128x4xf32>, vector<128x4xf32>, vector<128x4xf32>, vector<128x4xf32>, vector<128x4xf32>, vector<128x4xf32>, vector<128x4xf32>, vector<128x4xf32>, vector<128x4xf32> -> vector<128x36xf32>
    %cst_64 = arith.constant dense<0.000000e+00> : vector<128x8xf32>
    %38 = tpu.matmul %37, %9, %cst_64 {dimension_numbers = #tpu.dot_dimension_numbers<[1], [0], [0], [1], [0, 0, 1, 1], [], []>} : vector<128x36xf32>, vector<36x8xf32>, vector<128x8xf32> -> vector<128x8xf32>
    %cst_65 = arith.constant dense<0.000000e+00> : vector<8xf32>
    %39 = vector.multi_reduction <add>, %38, %cst_65 [0] : vector<128x8xf32> to vector<8xf32>
    %40 = vector.shape_cast %39 : vector<8xf32> to vector<1x8xf32>
    %cst_66 = arith.constant 7.812500e-03 : f32
    %41 = vector.broadcast %cst_66 : f32 to vector<1x8xf32>
    %42 = arith.mulf %40, %41 : vector<1x8xf32>
    %43 = arith.mulf %38, %38 : vector<128x8xf32>
    %cst_67 = arith.constant dense<0.000000e+00> : vector<8xf32>
    %44 = vector.multi_reduction <add>, %43, %cst_67 [0] : vector<128x8xf32> to vector<8xf32>
    %45 = vector.shape_cast %44 : vector<8xf32> to vector<1x8xf32>
    %cst_68 = arith.constant 7.812500e-03 : f32
    %46 = vector.broadcast %cst_68 : f32 to vector<1x8xf32>
    %47 = arith.mulf %45, %46 : vector<1x8xf32>
    %48 = arith.mulf %42, %42 : vector<1x8xf32>
    %49 = arith.subf %47, %48 : vector<1x8xf32>
    %cst_69 = arith.constant 9.99999974E-6 : f32
    %50 = vector.broadcast %cst_69 : f32 to vector<1x8xf32>
    %51 = arith.addf %49, %50 : vector<1x8xf32>
    %52 = math.rsqrt %51 : vector<1x8xf32>
    %53 = arith.mulf %10, %52 : vector<1x8xf32>
    %54 = arith.mulf %42, %53 : vector<1x8xf32>
    %55 = arith.subf %11, %54 : vector<1x8xf32>
    %56 = vector.broadcast %53 : vector<1x8xf32> to vector<128x8xf32>
    %57 = arith.mulf %38, %56 : vector<128x8xf32>
    %58 = vector.broadcast %55 : vector<1x8xf32> to vector<128x8xf32>
    %59 = arith.addf %57, %58 : vector<128x8xf32>
    %cst_70 = arith.constant 0.000000e+00 : f32
    %60 = vector.broadcast %cst_70 : f32 to vector<128x8xf32>
    %61 = arith.maximumf %59, %60 : vector<128x8xf32>
    %62 = vector.shape_cast %61 : vector<128x8xf32> to vector<2x8x8x8xf32>
    %c0_71 = arith.constant 0 : index
    %c0_72 = arith.constant 0 : index
    %63 = vector.load %arg4[%c0_71, %c0_72] : memref<72x8xf32, #tpu.memory_space<vmem>>, vector<72x8xf32>
    %c0_73 = arith.constant 0 : index
    %c0_74 = arith.constant 0 : index
    %64 = vector.load %arg5[%c0_73, %c0_74] : memref<1x8xf32, #tpu.memory_space<vmem>>, vector<1x8xf32>
    %c0_75 = arith.constant 0 : index
    %c0_76 = arith.constant 0 : index
    %65 = vector.load %arg6[%c0_75, %c0_76] : memref<1x8xf32, #tpu.memory_space<vmem>>, vector<1x8xf32>
    %c0_77 = arith.constant 0 : index
    %c1_78 = arith.constant 1 : index
    %c1_79 = arith.constant 1 : index
    %c0_80 = arith.constant 0 : index
    %66 = vector.load %arg9[%c0_77, %c1_78, %c1_79, %c0_80] : memref<2x10x10x8xf32, #tpu.memory_space<vmem>>, vector<2x8x8x8xf32>
    tpu.vector_store %arg9[%c0_77, %c1_78, %c1_79, %c0_80], %62 {strides = array<i32>} : memref<2x10x10x8xf32, #tpu.memory_space<vmem>>, vector<2x8x8x8xf32>,
    %cst_81 = arith.constant 0.000000e+00 : f32
    %67 = vector.broadcast %cst_81 : f32 to vector<2x1x10x8xf32>
    %c0_82 = arith.constant 0 : index
    %c0_83 = arith.constant 0 : index
    %c0_84 = arith.constant 0 : index
    %c0_85 = arith.constant 0 : index
    %68 = vector.load %arg9[%c0_82, %c0_83, %c0_84, %c0_85] : memref<2x10x10x8xf32, #tpu.memory_space<vmem>>, vector<2x1x10x8xf32>
    tpu.vector_store %arg9[%c0_82, %c0_83, %c0_84, %c0_85], %67 {strides = array<i32>} : memref<2x10x10x8xf32, #tpu.memory_space<vmem>>, vector<2x1x10x8xf32>,
    %c0_86 = arith.constant 0 : index
    %c9_87 = arith.constant 9 : index
    %c0_88 = arith.constant 0 : index
    %c0_89 = arith.constant 0 : index
    %69 = vector.load %arg9[%c0_86, %c9_87, %c0_88, %c0_89] : memref<2x10x10x8xf32, #tpu.memory_space<vmem>>, vector<2x1x10x8xf32>
    tpu.vector_store %arg9[%c0_86, %c9_87, %c0_88, %c0_89], %67 {strides = array<i32>} : memref<2x10x10x8xf32, #tpu.memory_space<vmem>>, vector<2x1x10x8xf32>,
    %cst_90 = arith.constant 0.000000e+00 : f32
    %70 = vector.broadcast %cst_90 : f32 to vector<2x10x1x8xf32>
    %c0_91 = arith.constant 0 : index
    %c0_92 = arith.constant 0 : index
    %c0_93 = arith.constant 0 : index
    %c0_94 = arith.constant 0 : index
    %71 = vector.load %arg9[%c0_91, %c0_92, %c0_93, %c0_94] : memref<2x10x10x8xf32, #tpu.memory_space<vmem>>, vector<2x10x1x8xf32>
    tpu.vector_store %arg9[%c0_91, %c0_92, %c0_93, %c0_94], %70 {strides = array<i32>} : memref<2x10x10x8xf32, #tpu.memory_space<vmem>>, vector<2x10x1x8xf32>,
    %c0_95 = arith.constant 0 : index
    %c0_96 = arith.constant 0 : index
    %c9_97 = arith.constant 9 : index
    %c0_98 = arith.constant 0 : index
    %72 = vector.load %arg9[%c0_95, %c0_96, %c9_97, %c0_98] : memref<2x10x10x8xf32, #tpu.memory_space<vmem>>, vector<2x10x1x8xf32>
    tpu.vector_store %arg9[%c0_95, %c0_96, %c9_97, %c0_98], %70 {strides = array<i32>} : memref<2x10x10x8xf32, #tpu.memory_space<vmem>>, vector<2x10x1x8xf32>,
    %c0_99 = arith.constant 0 : index
    %c0_100 = arith.constant 0 : index
    %c0_101 = arith.constant 0 : index
    %c0_102 = arith.constant 0 : index
    %73 = vector.load %arg9[%c0_99, %c0_100, %c0_101, %c0_102] : memref<2x10x10x8xf32, #tpu.memory_space<vmem>>, vector<2x8x8x8xf32>
    %74 = vector.shape_cast %73 : vector<2x8x8x8xf32> to vector<128x8xf32>
    %c0_103 = arith.constant 0 : index
    %c0_104 = arith.constant 0 : index
    %c1_105 = arith.constant 1 : index
    %c0_106 = arith.constant 0 : index
    %75 = vector.load %arg9[%c0_103, %c0_104, %c1_105, %c0_106] : memref<2x10x10x8xf32, #tpu.memory_space<vmem>>, vector<2x8x8x8xf32>
    %76 = vector.shape_cast %75 : vector<2x8x8x8xf32> to vector<128x8xf32>
    %c0_107 = arith.constant 0 : index
    %c0_108 = arith.constant 0 : index
    %c2_109 = arith.constant 2 : index
    %c0_110 = arith.constant 0 : index
    %77 = vector.load %arg9[%c0_107, %c0_108, %c2_109, %c0_110] : memref<2x10x10x8xf32, #tpu.memory_space<vmem>>, vector<2x8x8x8xf32>
    %78 = vector.shape_cast %77 : vector<2x8x8x8xf32> to vector<128x8xf32>
    %c0_111 = arith.constant 0 : index
    %c1_112 = arith.constant 1 : index
    %c0_113 = arith.constant 0 : index
    %c0_114 = arith.constant 0 : index
    %79 = vector.load %arg9[%c0_111, %c1_112, %c0_113, %c0_114] : memref<2x10x10x8xf32, #tpu.memory_space<vmem>>, vector<2x8x8x8xf32>
    %80 = vector.shape_cast %79 : vector<2x8x8x8xf32> to vector<128x8xf32>
    %c0_115 = arith.constant 0 : index
    %c1_116 = arith.constant 1 : index
    %c1_117 = arith.constant 1 : index
    %c0_118 = arith.constant 0 : index
    %81 = vector.load %arg9[%c0_115, %c1_116, %c1_117, %c0_118] : memref<2x10x10x8xf32, #tpu.memory_space<vmem>>, vector<2x8x8x8xf32>
    %82 = vector.shape_cast %81 : vector<2x8x8x8xf32> to vector<128x8xf32>
    %c0_119 = arith.constant 0 : index
    %c1_120 = arith.constant 1 : index
    %c2_121 = arith.constant 2 : index
    %c0_122 = arith.constant 0 : index
    %83 = vector.load %arg9[%c0_119, %c1_120, %c2_121, %c0_122] : memref<2x10x10x8xf32, #tpu.memory_space<vmem>>, vector<2x8x8x8xf32>
    %84 = vector.shape_cast %83 : vector<2x8x8x8xf32> to vector<128x8xf32>
    %c0_123 = arith.constant 0 : index
    %c2_124 = arith.constant 2 : index
    %c0_125 = arith.constant 0 : index
    %c0_126 = arith.constant 0 : index
    %85 = vector.load %arg9[%c0_123, %c2_124, %c0_125, %c0_126] : memref<2x10x10x8xf32, #tpu.memory_space<vmem>>, vector<2x8x8x8xf32>
    %86 = vector.shape_cast %85 : vector<2x8x8x8xf32> to vector<128x8xf32>
    %c0_127 = arith.constant 0 : index
    %c2_128 = arith.constant 2 : index
    %c1_129 = arith.constant 1 : index
    %c0_130 = arith.constant 0 : index
    %87 = vector.load %arg9[%c0_127, %c2_128, %c1_129, %c0_130] : memref<2x10x10x8xf32, #tpu.memory_space<vmem>>, vector<2x8x8x8xf32>
    %88 = vector.shape_cast %87 : vector<2x8x8x8xf32> to vector<128x8xf32>
    %c0_131 = arith.constant 0 : index
    %c2_132 = arith.constant 2 : index
    %c2_133 = arith.constant 2 : index
    %c0_134 = arith.constant 0 : index
    %89 = vector.load %arg9[%c0_131, %c2_132, %c2_133, %c0_134] : memref<2x10x10x8xf32, #tpu.memory_space<vmem>>, vector<2x8x8x8xf32>
    %90 = vector.shape_cast %89 : vector<2x8x8x8xf32> to vector<128x8xf32>
    %91 = tpu.concatenate %74, %76, %78, %80, %82, %84, %86, %88, %90 in 1 : vector<128x8xf32>, vector<128x8xf32>, vector<128x8xf32>, vector<128x8xf32>, vector<128x8xf32>, vector<128x8xf32>, vector<128x8xf32>, vector<128x8xf32>, vector<128x8xf32> -> vector<128x72xf32>
    %cst_135 = arith.constant dense<0.000000e+00> : vector<128x8xf32>
    %92 = tpu.matmul %91, %63, %cst_135 {dimension_numbers = #tpu.dot_dimension_numbers<[1], [0], [0], [1], [0, 0, 1, 1], [], []>} : vector<128x72xf32>, vector<72x8xf32>, vector<128x8xf32> -> vector<128x8xf32>
    %cst_136 = arith.constant dense<0.000000e+00> : vector<8xf32>
    %93 = vector.multi_reduction <add>, %92, %cst_136 [0] : vector<128x8xf32> to vector<8xf32>
    %94 = vector.shape_cast %93 : vector<8xf32> to vector<1x8xf32>
    %cst_137 = arith.constant 7.812500e-03 : f32
    %95 = vector.broadcast %cst_137 : f32 to vector<1x8xf32>
    %96 = arith.mulf %94, %95 : vector<1x8xf32>
    %97 = arith.mulf %92, %92 : vector<128x8xf32>
    %cst_138 = arith.constant dense<0.000000e+00> : vector<8xf32>
    %98 = vector.multi_reduction <add>, %97, %cst_138 [0] : vector<128x8xf32> to vector<8xf32>
    %99 = vector.shape_cast %98 : vector<8xf32> to vector<1x8xf32>
    %cst_139 = arith.constant 7.812500e-03 : f32
    %100 = vector.broadcast %cst_139 : f32 to vector<1x8xf32>
    %101 = arith.mulf %99, %100 : vector<1x8xf32>
    %102 = arith.mulf %96, %96 : vector<1x8xf32>
    %103 = arith.subf %101, %102 : vector<1x8xf32>
    %cst_140 = arith.constant 9.99999974E-6 : f32
    %104 = vector.broadcast %cst_140 : f32 to vector<1x8xf32>
    %105 = arith.addf %103, %104 : vector<1x8xf32>
    %106 = math.rsqrt %105 : vector<1x8xf32>
    %107 = arith.mulf %64, %106 : vector<1x8xf32>
    %108 = arith.mulf %96, %107 : vector<1x8xf32>
    %109 = arith.subf %65, %108 : vector<1x8xf32>
    %110 = vector.broadcast %107 : vector<1x8xf32> to vector<128x8xf32>
    %111 = arith.mulf %92, %110 : vector<128x8xf32>
    %112 = vector.broadcast %109 : vector<1x8xf32> to vector<128x8xf32>
    %113 = arith.addf %111, %112 : vector<128x8xf32>
    %cst_141 = arith.constant 0.000000e+00 : f32
    %114 = vector.broadcast %cst_141 : f32 to vector<128x8xf32>
    %115 = arith.maximumf %113, %114 : vector<128x8xf32>
    %116 = vector.shape_cast %115 : vector<128x8xf32> to vector<2x8x8x8xf32>
    %c0_142 = arith.constant 0 : index
    %c0_143 = arith.constant 0 : index
    %c0_144 = arith.constant 0 : index
    %c0_145 = arith.constant 0 : index
    %117 = vector.load %arg7[%c0_142, %c0_143, %c0_144, %c0_145] : memref<2x8x8x8xf32, #tpu.memory_space<vmem>>, vector<2x8x8x8xf32>
    tpu.vector_store %arg7[%c0_142, %c0_143, %c0_144, %c0_145], %116 {strides = array<i32>} : memref<2x8x8x8xf32, #tpu.memory_space<vmem>>, vector<2x8x8x8xf32>,
    return
  }
}

</mosaic_0001>

<llo_original>
// kernel: down_forward.1
$region0: #{down_forward.1}
  #allocation0 [shape = 'u32[]', space=smem, size = 0x4, offset = 0x4, fixed_abs, tag = 'smem constant byte address 0x4 - core index']
  #allocation1 [shape = 'u32[72,128]{1,0:T(1,128)}', space=vmem, size = 0x9000, scoped, tag = 'internal scratch']
  #allocation2 [shape = 'f32[2,10,10,4]{3,2,1,0:T(8,128)}', space=vmem, size = 0x28000, scoped, tag = 'scratch operand']
  #allocation3 [shape = 'f32[2,10,10,8]{3,2,1,0:T(8,128)}', space=vmem, size = 0x28000, scoped, tag = 'scratch operand']
  %s0 = inlined_call_operand.vmem [shape: f32[2,8,2,8,8], index: 0, kind: input, shape index: {}]
  %s1 = inlined_call_operand.vmem [shape: f32[36,8], index: 1, kind: input, shape index: {}]
  %s2 = inlined_call_operand.vmem [shape: f32[1,8], index: 2, kind: input, shape index: {}]
  %s3 = inlined_call_operand.vmem [shape: f32[1,8], index: 3, kind: input, shape index: {}]
  %s4 = inlined_call_operand.vmem [shape: f32[72,8], index: 4, kind: input, shape index: {}]
  %s5 = inlined_call_operand.vmem [shape: f32[1,8], index: 5, kind: input, shape index: {}]
  %s6 = inlined_call_operand.vmem [shape: f32[1,8], index: 6, kind: input, shape index: {}]
  %s7 = inlined_call_operand.vmem [shape: f32[2,8,8,8], index: 7, kind: output, shape index: {}]
  %s8 = sld [smem:[#allocation0]]
  $region38: #{down_forward.1} parent=0
    _
  %s10 = ssub.s32 1, %s8
  %s11 = scalar_select 0, %s10, %s8
  // Predicated region
  $region2: #{down_forward.1} parent=0 // pred_check
    _
  $region3: #{down_forward.1} parent=0 // pred_check_branch
    %13 = sbr.rel (0) target = $region5
  $region4: #{down_forward.1} parent=0 // pred_region
    _
  $region5: #{down_forward.1} parent=0 // pred_fallthru
    _
  // Predicated region
  $region6: #{down_forward.1} parent=0 // pred_check
    _
  $region7: #{down_forward.1} parent=0 // pred_check_branch
    %15 = sbr.rel (0) target = $region9
  $region8: #{down_forward.1} parent=0 // pred_region
    _
  $region9: #{down_forward.1} parent=0 // pred_fallthru
    _
  // Predicated region
  $region10: #{down_forward.1} parent=0 // pred_check
    _
  $region11: #{down_forward.1} parent=0 // pred_check_branch
    %17 = sbr.rel (0) target = $region13
  $region12: #{down_forward.1} parent=0 // pred_region
    _
  $region13: #{down_forward.1} parent=0 // pred_fallthru
    _
  // Predicated region
  $region14: #{down_forward.1} parent=0 // pred_check
    _
  $region15: #{down_forward.1} parent=0 // pred_check_branch
    %19 = sbr.rel (0) target = $region17
  $region16: #{down_forward.1} parent=0 // pred_region
    _
  $region17: #{down_forward.1} parent=0 // pred_fallthru
    _
  // Predicated region
  $region18: #{down_forward.1} parent=0 // pred_check
    _
  $region19: #{down_forward.1} parent=0 // pred_check_branch
    %21 = sbr.rel (0) target = $region21
  $region20: #{down_forward.1} parent=0 // pred_region
    _
  $region21: #{down_forward.1} parent=0 // pred_fallthru
    _
  // Predicated region
  $region22: #{down_forward.1} parent=0 // pred_check
    _
  $region23: #{down_forward.1} parent=0 // pred_check_branch
    %23 = sbr.rel (0) target = $region25
  $region24: #{down_forward.1} parent=0 // pred_region
    _
  $region25: #{down_forward.1} parent=0 // pred_fallthru
    _
  // Predicated region
  $region26: #{down_forward.1} parent=0 // pred_check
    _
  $region27: #{down_forward.1} parent=0 // pred_check_branch
    %25 = sbr.rel (0) target = $region29
  $region28: #{down_forward.1} parent=0 // pred_region
    _
  $region29: #{down_forward.1} parent=0 // pred_fallthru
    _
  %v26 = vld [vmem:[%s0] sm:$0xff]
  %v27 = vld [vmem:[%s0 + $0x8] sm:$0xff]
  %v28 = vld [vmem:[%s0 + $0x10] sm:$0xff]
  %v29 = vld [vmem:[%s0 + $0x18] sm:$0xff]
  %v30 = vld [vmem:[%s0 + $0x20] sm:$0xff]
  %v31 = vld [vmem:[%s0 + $0x28] sm:$0xff]
  %v32 = vld [vmem:[%s0 + $0x30] sm:$0xff]
  %v33 = vld [vmem:[%s0 + $0x38] sm:$0xff]
  %v34 = vld [vmem:[%s0 + $0x40] sm:$0xff]
  %v35 = vld [vmem:[%s0 + $0x48] sm:$0xff]
  %v36 = vld [vmem:[%s0 + $0x50] sm:$0xff]
  %v37 = vld [vmem:[%s0 + $0x58] sm:$0xff]
  %v38 = vld [vmem:[%s0 + $0x60] sm:$0xff]
  %v39 = vld [vmem:[%s0 + $0x68] sm:$0xff]
  %v40 = vld [vmem:[%s0 + $0x70] sm:$0xff]
  %v41 = vld [vmem:[%s0 + $0x78] sm:$0xff]
  %v42 = vld [vmem:[%s0 + $0x80] sm:$0xff]
  %v43 = vld [vmem:[%s0 + $0x88] sm:$0xff]
  %v44 = vld [vmem:[%s0 + $0x90] sm:$0xff]
  %v45 = vld [vmem:[%s0 + $0x98] sm:$0xff]
  %v46 = vld [vmem:[%s0 + $0xa0] sm:$0xff]
  %v47 = vld [vmem:[%s0 + $0xa8] sm:$0xff]
  %v48 = vld [vmem:[%s0 + $0xb0] sm:$0xff]
  %v49 = vld [vmem:[%s0 + $0xb8] sm:$0xff]
  %v50 = vld [vmem:[%s0 + $0xc0] sm:$0xff]
  %v51 = vld [vmem:[%s0 + $0xc8] sm:$0xff]
  %v52 = vld [vmem:[%s0 + $0xd0] sm:$0xff]
  %v53 = vld [vmem:[%s0 + $0xd8] sm:$0xff]
  %v54 = vld [vmem:[%s0 + $0xe0] sm:$0xff]
  %v55 = vld [vmem:[%s0 + $0xe8] sm:$0xff]
  %v56 = vld [vmem:[%s0 + $0xf0] sm:$0xff]
  %v57 = vld [vmem:[%s0 + $0xf8] sm:$0xff]
  %v58 = vmax.f32 %v26, %v27
  %v59 = vmax.f32 %v28, %v29
  %v60 = vmax.f32 %v30, %v31
  %v61 = vmax.f32 %v32, %v33
  %v62 = vmax.f32 %v34, %v35
  %v63 = vmax.f32 %v36, %v37
  %v64 = vmax.f32 %v38, %v39
  %v65 = vmax.f32 %v40, %v41
  %v66 = vmax.f32 %v42, %v43
  %v67 = vmax.f32 %v44, %v45
  %v68 = vmax.f32 %v46, %v47
  %v69 = vmax.f32 %v48, %v49
  %v70 = vmax.f32 %v50, %v51
  %v71 = vmax.f32 %v52, %v53
  %v72 = vmax.f32 %v54, %v55
  %v73 = vmax.f32 %v56, %v57
  %90 = vrot.lane.b32.xlu0 %v58, 124
  %v91 = vpop.permute.xlu0 %90
  %92 = vrot.lane.b32.xlu0 %v59, 124
  %v93 = vpop.permute.xlu0 %92
  %94 = vrot.lane.b32.xlu0 %v60, 124
  %v95 = vpop.permute.xlu0 %94
  %96 = vrot.lane.b32.xlu0 %v61, 124
  %v97 = vpop.permute.xlu0 %96
  %98 = vrot.lane.b32.xlu0 %v62, 124
  %v99 = vpop.permute.xlu0 %98
  %100 = vrot.lane.b32.xlu0 %v63, 124
  %v101 = vpop.permute.xlu0 %100
  %102 = vrot.lane.b32.xlu0 %v64, 124
  %v103 = vpop.permute.xlu0 %102
  %104 = vrot.lane.b32.xlu0 %v65, 124
  %v105 = vpop.permute.xlu0 %104
  %106 = vrot.lane.b32.xlu0 %v66, 124
  %v107 = vpop.permute.xlu0 %106
  %108 = vrot.lane.b32.xlu0 %v67, 124
  %v109 = vpop.permute.xlu0 %108
  %110 = vrot.lane.b32.xlu0 %v68, 124
  %v111 = vpop.permute.xlu0 %110
  %112 = vrot.lane.b32.xlu0 %v69, 124
  %v113 = vpop.permute.xlu0 %112
  %114 = vrot.lane.b32.xlu0 %v70, 124
  %v115 = vpop.permute.xlu0 %114
  %116 = vrot.lane.b32.xlu0 %v71, 124
  %v117 = vpop.permute.xlu0 %116
  %118 = vrot.lane.b32.xlu0 %v72, 124
  %v119 = vpop.permute.xlu0 %118
  %120 = vrot.lane.b32.xlu0 %v73, 124
  %v121 = vpop.permute.xlu0 %120
  %v138 = vmax.f32 %v58, %v91
  %v139 = vmax.f32 %v59, %v93
  %v140 = vmax.f32 %v60, %v95
  %v141 = vmax.f32 %v61, %v97
  %v142 = vmax.f32 %v62, %v99
  %v143 = vmax.f32 %v63, %v101
  %v144 = vmax.f32 %v64, %v103
  %v145 = vmax.f32 %v65, %v105
  %v146 = vmax.f32 %v66, %v107
  %v147 = vmax.f32 %v67, %v109
  %v148 = vmax.f32 %v68, %v111
  %v149 = vmax.f32 %v69, %v113
  %v150 = vmax.f32 %v70, %v115
  %v151 = vmax.f32 %v71, %v117
  %v152 = vmax.f32 %v72, %v119
  %v153 = vmax.f32 %v73, %v121
  %v154 = vld [vmem:[%s1] sm:$0xff]
  %v155 = vld [vmem:[%s1 + $0x8] sm:$0xff]
  %v156 = vld [vmem:[%s1 + $0x10] sm:$0xff]
  %v157 = vld [vmem:[%s1 + $0x18] sm:$0xff]
  %v158 = vld [vmem:[%s1 + $0x20] sm:$0xf]
  %v159 = vld [vmem:[%s2] sm:$0x1]
  %v160 = vld [vmem:[%s3] sm:$0x1]
  %s161 = scalar_lea.vmem [#allocation2], 16
  %vm162 = vcmask 31744
  %163 = vst.msk [vmem:[%s161 + $0x1] sm:$0xff] %vm162, %v138
  %164 = vst.msk [vmem:[%s161 + $0x11] sm:$0xff] %vm162, %v139
  %165 = vst.msk [vmem:[%s161 + $0x21] sm:$0xff] %vm162, %v140
  %166 = vst.msk [vmem:[%s161 + $0x31] sm:$0xff] %vm162, %v141
  %167 = vst.msk [vmem:[%s161 + $0x41] sm:$0xff] %vm162, %v142
  %168 = vst.msk [vmem:[%s161 + $0x51] sm:$0xff] %vm162, %v143
  %169 = vst.msk [vmem:[%s161 + $0x61] sm:$0xff] %vm162, %v144
  %170 = vst.msk [vmem:[%s161 + $0x71] sm:$0xff] %vm162, %v145
  %171 = vst.msk [vmem:[%s161 + $0xa1] sm:$0xff] %vm162, %v146
  %172 = vst.msk [vmem:[%s161 + $0xb1] sm:$0xff] %vm162, %v147
  %173 = vst.msk [vmem:[%s161 + $0xc1] sm:$0xff] %vm162, %v148
  %174 = vst.msk [vmem:[%s161 + $0xd1] sm:$0xff] %vm162, %v149
  %175 = vst.msk [vmem:[%s161 + $0xe1] sm:$0xff] %vm162, %v150
  %176 = vst.msk [vmem:[%s161 + $0xf1] sm:$0xff] %vm162, %v151
  %177 = vst.msk [vmem:[%s161 + $0x101] sm:$0xff] %vm162, %v152
  %178 = vst.msk [vmem:[%s161 + $0x111] sm:$0xff] %vm162, %v153
  %179 = vst.msk [vmem:[#allocation2] sm:$0xff] %vm162, 0.0
  %vm180 = vcmask 25600
  %181 = vst.msk [vmem:[#allocation2 + $0x8] sm:$0x3] %vm180, 0.0
  %182 = vst.msk [vmem:[#allocation2 + $0xa0] sm:$0xff] %vm162, 0.0
  %183 = vst.msk [vmem:[#allocation2 + $0xa8] sm:$0x3] %vm180, 0.0
  %s184 = scalar_lea.vmem [#allocation2], 144
  %185 = vst.msk [vmem:[%s184] sm:$0xff] %vm162, 0.0
  %186 = vst.msk [vmem:[%s184 + $0x8] sm:$0x3] %vm180, 0.0
  %187 = vst.msk [vmem:[%s184 + $0xa0] sm:$0xff] %vm162, 0.0
  %188 = vst.msk [vmem:[%s184 + $0xa8] sm:$0x3] %vm180, 0.0
  %vm189 = vcmask 24576
  %190 = vst.msk [vmem:[#allocation2] sm:$0x1] %vm189, 0.0
  %191 = vst.msk [vmem:[#allocation2 + $0x10] sm:$0x1] %vm189, 0.0
  %192 = vst.msk [vmem:[#allocation2 + $0x20] sm:$0x1] %vm189, 0.0
  %193 = vst.msk [vmem:[#allocation2 + $0x30] sm:$0x1] %vm189, 0.0
  %194 = vst.msk [vmem:[#allocation2 + $0x40] sm:$0x1] %vm189, 0.0
  %195 = vst.msk [vmem:[#allocation2 + $0x50] sm:$0x1] %vm189, 0.0
  %196 = vst.msk [vmem:[#allocation2 + $0x60] sm:$0x1] %vm189, 0.0
  %197 = vst.msk [vmem:[#allocation2 + $0x70] sm:$0x1] %vm189, 0.0
  %198 = vst.msk [vmem:[#allocation2 + $0x80] sm:$0x1] %vm189, 0.0
  %199 = vst.msk [vmem:[#allocation2 + $0x90] sm:$0x1] %vm189, 0.0
  %200 = vst.msk [vmem:[#allocation2 + $0xa0] sm:$0x1] %vm189, 0.0
  %201 = vst.msk [vmem:[#allocation2 + $0xb0] sm:$0x1] %vm189, 0.0
  %202 = vst.msk [vmem:[#allocation2 + $0xc0] sm:$0x1] %vm189, 0.0
  %203 = vst.msk [vmem:[#allocation2 + $0xd0] sm:$0x1] %vm189, 0.0
  %204 = vst.msk [vmem:[#allocation2 + $0xe0] sm:$0x1] %vm189, 0.0
  %205 = vst.msk [vmem:[#allocation2 + $0xf0] sm:$0x1] %vm189, 0.0
  %206 = vst.msk [vmem:[#allocation2 + $0x100] sm:$0x1] %vm189, 0.0
  %207 = vst.msk [vmem:[#allocation2 + $0x110] sm:$0x1] %vm189, 0.0
  %208 = vst.msk [vmem:[#allocation2 + $0x120] sm:$0x1] %vm189, 0.0
  %209 = vst.msk [vmem:[#allocation2 + $0x130] sm:$0x1] %vm189, 0.0
  %210 = vst.msk [vmem:[#allocation2 + $0x9] sm:$0x1] %vm189, 0.0
  %211 = vst.msk [vmem:[#allocation2 + $0x19] sm:$0x1] %vm189, 0.0
  %212 = vst.msk [vmem:[#allocation2 + $0x29] sm:$0x1] %vm189, 0.0
  %213 = vst.msk [vmem:[#allocation2 + $0x39] sm:$0x1] %vm189, 0.0
  %214 = vst.msk [vmem:[#allocation2 + $0x49] sm:$0x1] %vm189, 0.0
  %215 = vst.msk [vmem:[#allocation2 + $0x59] sm:$0x1] %vm189, 0.0
  %216 = vst.msk [vmem:[#allocation2 + $0x69] sm:$0x1] %vm189, 0.0
  %217 = vst.msk [vmem:[#allocation2 + $0x79] sm:$0x1] %vm189, 0.0
  %218 = vst.msk [vmem:[#allocation2 + $0x89] sm:$0x1] %vm189, 0.0
  %219 = vst.msk [vmem:[#allocation2 + $0x99] sm:$0x1] %vm189, 0.0
  %220 = vst.msk [vmem:[#allocation2 + $0xa9] sm:$0x1] %vm189, 0.0
  %221 = vst.msk [vmem:[#allocation2 + $0xb9] sm:$0x1] %vm189, 0.0
  %222 = vst.msk [vmem:[#allocation2 + $0xc9] sm:$0x1] %vm189, 0.0
  %223 = vst.msk [vmem:[#allocation2 + $0xd9] sm:$0x1] %vm189, 0.0
  %224 = vst.msk [vmem:[#allocation2 + $0xe9] sm:$0x1] %vm189, 0.0
  %225 = vst.msk [vmem:[#allocation2 + $0xf9] sm:$0x1] %vm189, 0.0
  %226 = vst.msk [vmem:[#allocation2 + $0x109] sm:$0x1] %vm189, 0.0
  %227 = vst.msk [vmem:[#allocation2 + $0x119] sm:$0x1] %vm189, 0.0
  %228 = vst.msk [vmem:[#allocation2 + $0x129] sm:$0x1] %vm189, 0.0
  %229 = vst.msk [vmem:[#allocation2 + $0x139] sm:$0x1] %vm189, 0.0
  %v230 = vld [vmem:[#allocation2] sm:$0xff]
  %v231 = vld [vmem:[#allocation2 + $0x10] sm:$0xff]
  %v232 = vld [vmem:[#allocation2 + $0x20] sm:$0xff]
  %v233 = vld [vmem:[#allocation2 + $0x30] sm:$0xff]
  %v234 = vld [vmem:[#allocation2 + $0x40] sm:$0xff]
  %v235 = vld [vmem:[#allocation2 + $0x50] sm:$0xff]
  %v236 = vld [vmem:[#allocation2 + $0x60] sm:$0xff]
  %v237 = vld [vmem:[#allocation2 + $0x70] sm:$0xff]
  %v238 = vld [vmem:[#allocation2 + $0xa0] sm:$0xff]
  %v239 = vld [vmem:[#allocation2 + $0xb0] sm:$0xff]
  %v240 = vld [vmem:[#allocation2 + $0xc0] sm:$0xff]
  %v241 = vld [vmem:[#allocation2 + $0xd0] sm:$0xff]
  %v242 = vld [vmem:[#allocation2 + $0xe0] sm:$0xff]
  %v243 = vld [vmem:[#allocation2 + $0xf0] sm:$0xff]
  %v244 = vld [vmem:[#allocation2 + $0x100] sm:$0xff]
  %v245 = vld [vmem:[#allocation2 + $0x110] sm:$0xff]
  %v246 = vld [vmem:[#allocation2 + $0x1] sm:$0xff]
  %v247 = vld [vmem:[#allocation2 + $0x11] sm:$0xff]
  %v248 = vld [vmem:[#allocation2 + $0x21] sm:$0xff]
  %v249 = vld [vmem:[#allocation2 + $0x31] sm:$0xff]
  %v250 = vld [vmem:[#allocation2 + $0x41] sm:$0xff]
  %v251 = vld [vmem:[#allocation2 + $0x51] sm:$0xff]
  %v252 = vld [vmem:[#allocation2 + $0x61] sm:$0xff]
  %v253 = vld [vmem:[#allocation2 + $0x71] sm:$0xff]
  %v254 = vld [vmem:[#allocation2 + $0xa1] sm:$0xff]
  %v255 = vld [vmem:[#allocation2 + $0xb1] sm:$0xff]
  %v256 = vld [vmem:[#allocation2 + $0xc1] sm:$0xff]
  %v257 = vld [vmem:[#allocation2 + $0xd1] sm:$0xff]
  %v258 = vld [vmem:[#allocation2 + $0xe1] sm:$0xff]
  %v259 = vld [vmem:[#allocation2 + $0xf1] sm:$0xff]
  %v260 = vld [vmem:[#allocation2 + $0x101] sm:$0xff]
  %v261 = vld [vmem:[#allocation2 + $0x111] sm:$0xff]
  %v262 = vld [vmem:[#allocation2 + $0x2] sm:$0xff]
  %v263 = vld [vmem:[#allocation2 + $0x12] sm:$0xff]
  %v264 = vld [vmem:[#allocation2 + $0x22] sm:$0xff]
  %v265 = vld [vmem:[#allocation2 + $0x32] sm:$0xff]
  %v266 = vld [vmem:[#allocation2 + $0x42] sm:$0xff]
  %v267 = vld [vmem:[#allocation2 + $0x52] sm:$0xff]
  %v268 = vld [vmem:[#allocation2 + $0x62] sm:$0xff]
  %v269 = vld [vmem:[#allocation2 + $0x72] sm:$0xff]
  %v270 = vld [vmem:[#allocation2 + $0xa2] sm:$0xff]
  %v271 = vld [vmem:[#allocation2 + $0xb2] sm:$0xff]
  %v272 = vld [vmem:[#allocation2 + $0xc2] sm:$0xff]
  %v273 = vld [vmem:[#allocation2 + $0xd2] sm:$0xff]
  %v274 = vld [vmem:[#allocation2 + $0xe2] sm:$0xff]
  %v275 = vld [vmem:[#allocation2 + $0xf2] sm:$0xff]
  %v276 = vld [vmem:[#allocation2 + $0x102] sm:$0xff]
  %v277 = vld [vmem:[#allocation2 + $0x112] sm:$0xff]
  %v278 = vld [vmem:[%s161] sm:$0xff]
  %v279 = vld [vmem:[%s161 + $0x10] sm:$0xff]
  %v280 = vld [vmem:[%s161 + $0x20] sm:$0xff]
  %v281 = vld [vmem:[%s161 + $0x30] sm:$0xff]
  %v282 = vld [vmem:[%s161 + $0x40] sm:$0xff]
  %v283 = vld [vmem:[%s161 + $0x50] sm:$0xff]
  %v284 = vld [vmem:[%s161 + $0x60] sm:$0xff]
  %v285 = vld [vmem:[%s161 + $0x70] sm:$0xff]
  %v286 = vld [vmem:[%s161 + $0xa0] sm:$0xff]
  %v287 = vld [vmem:[%s161 + $0xb0] sm:$0xff]
  %v288 = vld [vmem:[%s161 + $0xc0] sm:$0xff]
  %v289 = vld [vmem:[%s161 + $0xd0] sm:$0xff]
  %v290 = vld [vmem:[%s161 + $0xe0] sm:$0xff]
  %v291 = vld [vmem:[%s161 + $0xf0] sm:$0xff]
  %v292 = vld [vmem:[%s161 + $0x100] sm:$0xff]
  %v293 = vld [vmem:[%s161 + $0x110] sm:$0xff]
  %v294 = vld [vmem:[%s161 + $0x1] sm:$0xff]
  %v295 = vld [vmem:[%s161 + $0x11] sm:$0xff]
  %v296 = vld [vmem:[%s161 + $0x21] sm:$0xff]
  %v297 = vld [vmem:[%s161 + $0x31] sm:$0xff]
  %v298 = vld [vmem:[%s161 + $0x41] sm:$0xff]
  %v299 = vld [vmem:[%s161 + $0x51] sm:$0xff]
  %v300 = vld [vmem:[%s161 + $0x61] sm:$0xff]
  %v301 = vld [vmem:[%s161 + $0x71] sm:$0xff]
  %v302 = vld [vmem:[%s161 + $0xa1] sm:$0xff]
  %v303 = vld [vmem:[%s161 + $0xb1] sm:$0xff]
  %v304 = vld [vmem:[%s161 + $0xc1] sm:$0xff]
  %v305 = vld [vmem:[%s161 + $0xd1] sm:$0xff]
  %v306 = vld [vmem:[%s161 + $0xe1] sm:$0xff]
  %v307 = vld [vmem:[%s161 + $0xf1] sm:$0xff]
  %v308 = vld [vmem:[%s161 + $0x101] sm:$0xff]
  %v309 = vld [vmem:[%s161 + $0x111] sm:$0xff]
  %v310 = vld [vmem:[%s161 + $0x2] sm:$0xff]
  %v311 = vld [vmem:[%s161 + $0x12] sm:$0xff]
  %v312 = vld [vmem:[%s161 + $0x22] sm:$0xff]
  %v313 = vld [vmem:[%s161 + $0x32] sm:$0xff]
  %v314 = vld [vmem:[%s161 + $0x42] sm:$0xff]
  %v315 = vld [vmem:[%s161 + $0x52] sm:$0xff]
  %v316 = vld [vmem:[%s161 + $0x62] sm:$0xff]
  %v317 = vld [vmem:[%s161 + $0x72] sm:$0xff]
  %v318 = vld [vmem:[%s161 + $0xa2] sm:$0xff]
  %v319 = vld [vmem:[%s161 + $0xb2] sm:$0xff]
  %v320 = vld [vmem:[%s161 + $0xc2] sm:$0xff]
  %v321 = vld [vmem:[%s161 + $0xd2] sm:$0xff]
  %v322 = vld [vmem:[%s161 + $0xe2] sm:$0xff]
  %v323 = vld [vmem:[%s161 + $0xf2] sm:$0xff]
  %v324 = vld [vmem:[%s161 + $0x102] sm:$0xff]
  %v325 = vld [vmem:[%s161 + $0x112] sm:$0xff]
  %s326 = scalar_lea.vmem [#allocation2], 32
  %v327 = vld [vmem:[%s326] sm:$0xff]
  %v328 = vld [vmem:[%s326 + $0x10] sm:$0xff]
  %v329 = vld [vmem:[%s326 + $0x20] sm:$0xff]
  %v330 = vld [vmem:[%s326 + $0x30] sm:$0xff]
  %v331 = vld [vmem:[%s326 + $0x40] sm:$0xff]
  %v332 = vld [vmem:[%s326 + $0x50] sm:$0xff]
  %v333 = vld [vmem:[%s326 + $0x60] sm:$0xff]
  %v334 = vld [vmem:[%s326 + $0x70] sm:$0xff]
  %v335 = vld [vmem:[%s326 + $0xa0] sm:$0xff]
  %v336 = vld [vmem:[%s326 + $0xb0] sm:$0xff]
  %v337 = vld [vmem:[%s326 + $0xc0] sm:$0xff]
  %v338 = vld [vmem:[%s326 + $0xd0] sm:$0xff]
  %v339 = vld [vmem:[%s326 + $0xe0] sm:$0xff]
  %v340 = vld [vmem:[%s326 + $0xf0] sm:$0xff]
  %v341 = vld [vmem:[%s326 + $0x100] sm:$0xff]
  %v342 = vld [vmem:[%s326 + $0x110] sm:$0xff]
  %v343 = vld [vmem:[%s326 + $0x1] sm:$0xff]
  %v344 = vld [vmem:[%s326 + $0x11] sm:$0xff]
  %v345 = vld [vmem:[%s326 + $0x21] sm:$0xff]
  %v346 = vld [vmem:[%s326 + $0x31] sm:$0xff]
  %v347 = vld [vmem:[%s326 + $0x41] sm:$0xff]
  %v348 = vld [vmem:[%s326 + $0x51] sm:$0xff]
  %v349 = vld [vmem:[%s326 + $0x61] sm:$0xff]
  %v350 = vld [vmem:[%s326 + $0x71] sm:$0xff]
  %v351 = vld [vmem:[%s326 + $0xa1] sm:$0xff]
  %v352 = vld [vmem:[%s326 + $0xb1] sm:$0xff]
  %v353 = vld [vmem:[%s326 + $0xc1] sm:$0xff]
  %v354 = vld [vmem:[%s326 + $0xd1] sm:$0xff]
  %v355 = vld [vmem:[%s326 + $0xe1] sm:$0xff]
  %v356 = vld [vmem:[%s326 + $0xf1] sm:$0xff]
  %v357 = vld [vmem:[%s326 + $0x101] sm:$0xff]
  %v358 = vld [vmem:[%s326 + $0x111] sm:$0xff]
  %v359 = vld [vmem:[%s326 + $0x2] sm:$0xff]
  %v360 = vld [vmem:[%s326 + $0x12] sm:$0xff]
  %v361 = vld [vmem:[%s326 + $0x22] sm:$0xff]
  %v362 = vld [vmem:[%s326 + $0x32] sm:$0xff]
  %v363 = vld [vmem:[%s326 + $0x42] sm:$0xff]
  %v364 = vld [vmem:[%s326 + $0x52] sm:$0xff]
  %v365 = vld [vmem:[%s326 + $0x62] sm:$0xff]
  %v366 = vld [vmem:[%s326 + $0x72] sm:$0xff]
  %v367 = vld [vmem:[%s326 + $0xa2] sm:$0xff]
  %v368 = vld [vmem:[%s326 + $0xb2] sm:$0xff]
  %v369 = vld [vmem:[%s326 + $0xc2] sm:$0xff]
  %v370 = vld [vmem:[%s326 + $0xd2] sm:$0xff]
  %v371 = vld [vmem:[%s326 + $0xe2] sm:$0xff]
  %v372 = vld [vmem:[%s326 + $0xf2] sm:$0xff]
  %v373 = vld [vmem:[%s326 + $0x102] sm:$0xff]
  %v374 = vld [vmem:[%s326 + $0x112] sm:$0xff]
  %391 = vrot.lane.b32.xlu0 %v246, 4
  %v392 = vpop.permute.xlu0 %391
  %393 = vrot.lane.b32.xlu0 %v247, 4
  %v394 = vpop.permute.xlu0 %393
  %395 = vrot.lane.b32.xlu0 %v248, 4
  %v396 = vpop.permute.xlu0 %395
  %397 = vrot.lane.b32.xlu0 %v249, 4
  %v398 = vpop.permute.xlu0 %397
  %399 = vrot.lane.b32.xlu0 %v250, 4
  %v400 = vpop.permute.xlu0 %399
  %401 = vrot.lane.b32.xlu0 %v251, 4
  %v402 = vpop.permute.xlu0 %401
  %403 = vrot.lane.b32.xlu0 %v252, 4
  %v404 = vpop.permute.xlu0 %403
  %405 = vrot.lane.b32.xlu0 %v253, 4
  %v406 = vpop.permute.xlu0 %405
  %407 = vrot.lane.b32.xlu0 %v254, 4
  %v408 = vpop.permute.xlu0 %407
  %409 = vrot.lane.b32.xlu0 %v255, 4
  %v410 = vpop.permute.xlu0 %409
  %411 = vrot.lane.b32.xlu0 %v256, 4
  %v412 = vpop.permute.xlu0 %411
  %413 = vrot.lane.b32.xlu0 %v257, 4
  %v414 = vpop.permute.xlu0 %413
  %415 = vrot.lane.b32.xlu0 %v258, 4
  %v416 = vpop.permute.xlu0 %415
  %417 = vrot.lane.b32.xlu0 %v259, 4
  %v418 = vpop.permute.xlu0 %417
  %419 = vrot.lane.b32.xlu0 %v260, 4
  %v420 = vpop.permute.xlu0 %419
  %421 = vrot.lane.b32.xlu0 %v261, 4
  %v422 = vpop.permute.xlu0 %421
  %455 = vrot.lane.b32.xlu0 %v262, 8
  %v456 = vpop.permute.xlu0 %455
  %457 = vrot.lane.b32.xlu0 %v263, 8
  %v458 = vpop.permute.xlu0 %457
  %459 = vrot.lane.b32.xlu0 %v264, 8
  %v460 = vpop.permute.xlu0 %459
  %461 = vrot.lane.b32.xlu0 %v265, 8
  %v462 = vpop.permute.xlu0 %461
  %463 = vrot.lane.b32.xlu0 %v266, 8
  %v464 = vpop.permute.xlu0 %463
  %465 = vrot.lane.b32.xlu0 %v267, 8
  %v466 = vpop.permute.xlu0 %465
  %467 = vrot.lane.b32.xlu0 %v268, 8
  %v468 = vpop.permute.xlu0 %467
  %469 = vrot.lane.b32.xlu0 %v269, 8
  %v470 = vpop.permute.xlu0 %469
  %471 = vrot.lane.b32.xlu0 %v270, 8
  %v472 = vpop.permute.xlu0 %471
  %473 = vrot.lane.b32.xlu0 %v271, 8
  %v474 = vpop.permute.xlu0 %473
  %475 = vrot.lane.b32.xlu0 %v272, 8
  %v476 = vpop.permute.xlu0 %475
  %477 = vrot.lane.b32.xlu0 %v273, 8
  %v478 = vpop.permute.xlu0 %477
  %479 = vrot.lane.b32.xlu0 %v274, 8
  %v480 = vpop.permute.xlu0 %479
  %481 = vrot.lane.b32.xlu0 %v275, 8
  %v482 = vpop.permute.xlu0 %481
  %483 = vrot.lane.b32.xlu0 %v276, 8
  %v484 = vpop.permute.xlu0 %483
  %485 = vrot.lane.b32.xlu0 %v277, 8
  %v486 = vpop.permute.xlu0 %485
  %519 = vrot.lane.b32.xlu0 %v278, 12
  %v520 = vpop.permute.xlu0 %519
  %521 = vrot.lane.b32.xlu0 %v279, 12
  %v522 = vpop.permute.xlu0 %521
  %523 = vrot.lane.b32.xlu0 %v280, 12
  %v524 = vpop.permute.xlu0 %523
  %525 = vrot.lane.b32.xlu0 %v281, 12
  %v526 = vpop.permute.xlu0 %525
  %527 = vrot.lane.b32.xlu0 %v282, 12
  %v528 = vpop.permute.xlu0 %527
  %529 = vrot.lane.b32.xlu0 %v283, 12
  %v530 = vpop.permute.xlu0 %529
  %531 = vrot.lane.b32.xlu0 %v284, 12
  %v532 = vpop.permute.xlu0 %531
  %533 = vrot.lane.b32.xlu0 %v285, 12
  %v534 = vpop.permute.xlu0 %533
  %535 = vrot.lane.b32.xlu0 %v286, 12
  %v536 = vpop.permute.xlu0 %535
  %537 = vrot.lane.b32.xlu0 %v287, 12
  %v538 = vpop.permute.xlu0 %537
  %539 = vrot.lane.b32.xlu0 %v288, 12
  %v540 = vpop.permute.xlu0 %539
  %541 = vrot.lane.b32.xlu0 %v289, 12
  %v542 = vpop.permute.xlu0 %541
  %543 = vrot.lane.b32.xlu0 %v290, 12
  %v544 = vpop.permute.xlu0 %543
  %545 = vrot.lane.b32.xlu0 %v291, 12
  %v546 = vpop.permute.xlu0 %545
  %547 = vrot.lane.b32.xlu0 %v292, 12
  %v548 = vpop.permute.xlu0 %547
  %549 = vrot.lane.b32.xlu0 %v293, 12
  %v550 = vpop.permute.xlu0 %549
  %583 = vrot.lane.b32.xlu0 %v294, 16
  %v584 = vpop.permute.xlu0 %583
  %585 = vrot.lane.b32.xlu0 %v295, 16
  %v586 = vpop.permute.xlu0 %585
  %587 = vrot.lane.b32.xlu0 %v296, 16
  %v588 = vpop.permute.xlu0 %587
  %589 = vrot.lane.b32.xlu0 %v297, 16
  %v590 = vpop.permute.xlu0 %589
  %591 = vrot.lane.b32.xlu0 %v298, 16
  %v592 = vpop.permute.xlu0 %591
  %593 = vrot.lane.b32.xlu0 %v299, 16
  %v594 = vpop.permute.xlu0 %593
  %595 = vrot.lane.b32.xlu0 %v300, 16
  %v596 = vpop.permute.xlu0 %595
  %597 = vrot.lane.b32.xlu0 %v301, 16
  %v598 = vpop.permute.xlu0 %597
  %599 = vrot.lane.b32.xlu0 %v302, 16
  %v600 = vpop.permute.xlu0 %599
  %601 = vrot.lane.b32.xlu0 %v303, 16
  %v602 = vpop.permute.xlu0 %601
  %603 = vrot.lane.b32.xlu0 %v304, 16
  %v604 = vpop.permute.xlu0 %603
  %605 = vrot.lane.b32.xlu0 %v305, 16
  %v606 = vpop.permute.xlu0 %605
  %607 = vrot.lane.b32.xlu0 %v306, 16
  %v608 = vpop.permute.xlu0 %607
  %609 = vrot.lane.b32.xlu0 %v307, 16
  %v610 = vpop.permute.xlu0 %609
  %611 = vrot.lane.b32.xlu0 %v308, 16
  %v612 = vpop.permute.xlu0 %611
  %613 = vrot.lane.b32.xlu0 %v309, 16
  %v614 = vpop.permute.xlu0 %613
  %647 = vrot.lane.b32.xlu0 %v310, 20
  %v648 = vpop.permute.xlu0 %647
  %649 = vrot.lane.b32.xlu0 %v311, 20
  %v650 = vpop.permute.xlu0 %649
  %651 = vrot.lane.b32.xlu0 %v312, 20
  %v652 = vpop.permute.xlu0 %651
  %653 = vrot.lane.b32.xlu0 %v313, 20
  %v654 = vpop.permute.xlu0 %653
  %655 = vrot.lane.b32.xlu0 %v314, 20
  %v656 = vpop.permute.xlu0 %655
  %657 = vrot.lane.b32.xlu0 %v315, 20
  %v658 = vpop.permute.xlu0 %657
  %659 = vrot.lane.b32.xlu0 %v316, 20
  %v660 = vpop.permute.xlu0 %659
  %661 = vrot.lane.b32.xlu0 %v317, 20
  %v662 = vpop.permute.xlu0 %661
  %663 = vrot.lane.b32.xlu0 %v318, 20
  %v664 = vpop.permute.xlu0 %663
  %665 = vrot.lane.b32.xlu0 %v319, 20
  %v666 = vpop.permute.xlu0 %665
  %667 = vrot.lane.b32.xlu0 %v320, 20
  %v668 = vpop.permute.xlu0 %667
  %669 = vrot.lane.b32.xlu0 %v321, 20
  %v670 = vpop.permute.xlu0 %669
  %671 = vrot.lane.b32.xlu0 %v322, 20
  %v672 = vpop.permute.xlu0 %671
  %673 = vrot.lane.b32.xlu0 %v323, 20
  %v674 = vpop.permute.xlu0 %673
  %675 = vrot.lane.b32.xlu0 %v324, 20
  %v676 = vpop.permute.xlu0 %675
  %677 = vrot.lane.b32.xlu0 %v325, 20
  %v678 = vpop.permute.xlu0 %677
  %711 = vrot.lane.b32.xlu0 %v327, 24
  %v712 = vpop.permute.xlu0 %711
  %713 = vrot.lane.b32.xlu0 %v328, 24
  %v714 = vpop.permute.xlu0 %713
  %715 = vrot.lane.b32.xlu0 %v329, 24
  %v716 = vpop.permute.xlu0 %715
  %717 = vrot.lane.b32.xlu0 %v330, 24
  %v718 = vpop.permute.xlu0 %717
  %719 = vrot.lane.b32.xlu0 %v331, 24
  %v720 = vpop.permute.xlu0 %719
  %721 = vrot.lane.b32.xlu0 %v332, 24
  %v722 = vpop.permute.xlu0 %721
  %723 = vrot.lane.b32.xlu0 %v333, 24
  %v724 = vpop.permute.xlu0 %723
  %725 = vrot.lane.b32.xlu0 %v334, 24
  %v726 = vpop.permute.xlu0 %725
  %727 = vrot.lane.b32.xlu0 %v335, 24
  %v728 = vpop.permute.xlu0 %727
  %729 = vrot.lane.b32.xlu0 %v336, 24
  %v730 = vpop.permute.xlu0 %729
  %731 = vrot.lane.b32.xlu0 %v337, 24
  %v732 = vpop.permute.xlu0 %731
  %733 = vrot.lane.b32.xlu0 %v338, 24
  %v734 = vpop.permute.xlu0 %733
  %735 = vrot.lane.b32.xlu0 %v339, 24
  %v736 = vpop.permute.xlu0 %735
  %737 = vrot.lane.b32.xlu0 %v340, 24
  %v738 = vpop.permute.xlu0 %737
  %739 = vrot.lane.b32.xlu0 %v341, 24
  %v740 = vpop.permute.xlu0 %739
  %741 = vrot.lane.b32.xlu0 %v342, 24
  %v742 = vpop.permute.xlu0 %741
  %775 = vrot.lane.b32.xlu0 %v343, 28
  %v776 = vpop.permute.xlu0 %775
  %777 = vrot.lane.b32.xlu0 %v344, 28
  %v778 = vpop.permute.xlu0 %777
  %779 = vrot.lane.b32.xlu0 %v345, 28
  %v780 = vpop.permute.xlu0 %779
  %781 = vrot.lane.b32.xlu0 %v346, 28
  %v782 = vpop.permute.xlu0 %781
  %783 = vrot.lane.b32.xlu0 %v347, 28
  %v784 = vpop.permute.xlu0 %783
  %785 = vrot.lane.b32.xlu0 %v348, 28
  %v786 = vpop.permute.xlu0 %785
  %787 = vrot.lane.b32.xlu0 %v349, 28
  %v788 = vpop.permute.xlu0 %787
  %789 = vrot.lane.b32.xlu0 %v350, 28
  %v790 = vpop.permute.xlu0 %789
  %791 = vrot.lane.b32.xlu0 %v351, 28
  %v792 = vpop.permute.xlu0 %791
  %793 = vrot.lane.b32.xlu0 %v352, 28
  %v794 = vpop.permute.xlu0 %793
  %795 = vrot.lane.b32.xlu0 %v353, 28
  %v796 = vpop.permute.xlu0 %795
  %797 = vrot.lane.b32.xlu0 %v354, 28
  %v798 = vpop.permute.xlu0 %797
  %799 = vrot.lane.b32.xlu0 %v355, 28
  %v800 = vpop.permute.xlu0 %799
  %801 = vrot.lane.b32.xlu0 %v356, 28
  %v802 = vpop.permute.xlu0 %801
  %803 = vrot.lane.b32.xlu0 %v357, 28
  %v804 = vpop.permute.xlu0 %803
  %805 = vrot.lane.b32.xlu0 %v358, 28
  %v806 = vpop.permute.xlu0 %805
  %839 = vrot.lane.b32.xlu0 %v359, 32
  %v840 = vpop.permute.xlu0 %839
  %841 = vrot.lane.b32.xlu0 %v360, 32
  %v842 = vpop.permute.xlu0 %841
  %843 = vrot.lane.b32.xlu0 %v361, 32
  %v844 = vpop.permute.xlu0 %843
  %845 = vrot.lane.b32.xlu0 %v362, 32
  %v846 = vpop.permute.xlu0 %845
  %847 = vrot.lane.b32.xlu0 %v363, 32
  %v848 = vpop.permute.xlu0 %847
  %849 = vrot.lane.b32.xlu0 %v364, 32
  %v850 = vpop.permute.xlu0 %849
  %851 = vrot.lane.b32.xlu0 %v365, 32
  %v852 = vpop.permute.xlu0 %851
  %853 = vrot.lane.b32.xlu0 %v366, 32
  %v854 = vpop.permute.xlu0 %853
  %855 = vrot.lane.b32.xlu0 %v367, 32
  %v856 = vpop.permute.xlu0 %855
  %857 = vrot.lane.b32.xlu0 %v368, 32
  %v858 = vpop.permute.xlu0 %857
  %859 = vrot.lane.b32.xlu0 %v369, 32
  %v860 = vpop.permute.xlu0 %859
  %861 = vrot.lane.b32.xlu0 %v370, 32
  %v862 = vpop.permute.xlu0 %861
  %863 = vrot.lane.b32.xlu0 %v371, 32
  %v864 = vpop.permute.xlu0 %863
  %865 = vrot.lane.b32.xlu0 %v372, 32
  %v866 = vpop.permute.xlu0 %865
  %867 = vrot.lane.b32.xlu0 %v373, 32
  %v868 = vpop.permute.xlu0 %867
  %869 = vrot.lane.b32.xlu0 %v374, 32
  %v870 = vpop.permute.xlu0 %869
  %v887 = vsel %vm162, %v230, %v392
  %v888 = vsel %vm162, %v231, %v394
  %v889 = vsel %vm162, %v232, %v396
  %v890 = vsel %vm162, %v233, %v398
  %v891 = vsel %vm162, %v234, %v400
  %v892 = vsel %vm162, %v235, %v402
  %v893 = vsel %vm162, %v236, %v404
  %v894 = vsel %vm162, %v237, %v406
  %v895 = vsel %vm162, %v238, %v408
  %v896 = vsel %vm162, %v239, %v410
  %v897 = vsel %vm162, %v240, %v412
  %v898 = vsel %vm162, %v241, %v414
  %v899 = vsel %vm162, %v242, %v416
  %v900 = vsel %vm162, %v243, %v418
  %v901 = vsel %vm162, %v244, %v420
  %v902 = vsel %vm162, %v245, %v422
  %vm903 = vcmask 64512
  %v904 = vsel %vm903, %v887, %v456
  %v905 = vsel %vm903, %v888, %v458
  %v906 = vsel %vm903, %v889, %v460
  %v907 = vsel %vm903, %v890, %v462
  %v908 = vsel %vm903, %v891, %v464
  %v909 = vsel %vm903, %v892, %v466
  %v910 = vsel %vm903, %v893, %v468
  %v911 = vsel %vm903, %v894, %v470
  %v912 = vsel %vm903, %v895, %v472
  %v913 = vsel %vm903, %v896, %v474
  %v914 = vsel %vm903, %v897, %v476
  %v915 = vsel %vm903, %v898, %v478
  %v916 = vsel %vm903, %v899, %v480
  %v917 = vsel %vm903, %v900, %v482
  %v918 = vsel %vm903, %v901, %v484
  %v919 = vsel %vm903, %v902, %v486
  %vm920 = vcmask 97280
  %v921 = vsel %vm920, %v904, %v520
  %v922 = vsel %vm920, %v905, %v522
  %v923 = vsel %vm920, %v906, %v524
  %v924 = vsel %vm920, %v907, %v526
  %v925 = vsel %vm920, %v908, %v528
  %v926 = vsel %vm920, %v909, %v530
  %v927 = vsel %vm920, %v910, %v532
  %v928 = vsel %vm920, %v911, %v534
  %v929 = vsel %vm920, %v912, %v536
  %v930 = vsel %vm920, %v913, %v538
  %v931 = vsel %vm920, %v914, %v540
  %v932 = vsel %vm920, %v915, %v542
  %v933 = vsel %vm920, %v916, %v544
  %v934 = vsel %vm920, %v917, %v546
  %v935 = vsel %vm920, %v918, %v548
  %v936 = vsel %vm920, %v919, %v550
  %vm937 = vcmask 130048
  %v938 = vsel %vm937, %v921, %v584
  %v939 = vsel %vm937, %v922, %v586
  %v940 = vsel %vm937, %v923, %v588
  %v941 = vsel %vm937, %v924, %v590
  %v942 = vsel %vm937, %v925, %v592
  %v943 = vsel %vm937, %v926, %v594
  %v944 = vsel %vm937, %v927, %v596
  %v945 = vsel %vm937, %v928, %v598
  %v946 = vsel %vm937, %v929, %v600
  %v947 = vsel %vm937, %v930, %v602
  %v948 = vsel %vm937, %v931, %v604
  %v949 = vsel %vm937, %v932, %v606
  %v950 = vsel %vm937, %v933, %v608
  %v951 = vsel %vm937, %v934, %v610
  %v952 = vsel %vm937, %v935, %v612
  %v953 = vsel %vm937, %v936, %v614
  %vm954 = vcmask 162816
  %v955 = vsel %vm954, %v938, %v648
  %v956 = vsel %vm954, %v939, %v650
  %v957 = vsel %vm954, %v940, %v652
  %v958 = vsel %vm954, %v941, %v654
  %v959 = vsel %vm954, %v942, %v656
  %v960 = vsel %vm954, %v943, %v658
  %v961 = vsel %vm954, %v944, %v660
  %v962 = vsel %vm954, %v945, %v662
  %v963 = vsel %vm954, %v946, %v664
  %v964 = vsel %vm954, %v947, %v666
  %v965 = vsel %vm954, %v948, %v668
  %v966 = vsel %vm954, %v949, %v670
  %v967 = vsel %vm954, %v950, %v672
  %v968 = vsel %vm954, %v951, %v674
  %v969 = vsel %vm954, %v952, %v676
  %v970 = vsel %vm954, %v953, %v678
  %vm971 = vcmask 195584
  %v972 = vsel %vm971, %v955, %v712
  %v973 = vsel %vm971, %v956, %v714
  %v974 = vsel %vm971, %v957, %v716
  %v975 = vsel %vm971, %v958, %v718
  %v976 = vsel %vm971, %v959, %v720
  %v977 = vsel %vm971, %v960, %v722
  %v978 = vsel %vm971, %v961, %v724
  %v979 = vsel %vm971, %v962, %v726
  %v980 = vsel %vm971, %v963, %v728
  %v981 = vsel %vm971, %v964, %v730
  %v982 = vsel %vm971, %v965, %v732
  %v983 = vsel %vm971, %v966, %v734
  %v984 = vsel %vm971, %v967, %v736
  %v985 = vsel %vm971, %v968, %v738
  %v986 = vsel %vm971, %v969, %v740
  %v987 = vsel %vm971, %v970, %v742
  %vm988 = vcmask 228352
  %v989 = vsel %vm988, %v972, %v776
  %v990 = vsel %vm988, %v973, %v778
  %v991 = vsel %vm988, %v974, %v780
  %v992 = vsel %vm988, %v975, %v782
  %v993 = vsel %vm988, %v976, %v784
  %v994 = vsel %vm988, %v977, %v786
  %v995 = vsel %vm988, %v978, %v788
  %v996 = vsel %vm988, %v979, %v790
  %v997 = vsel %vm988, %v980, %v792
  %v998 = vsel %vm988, %v981, %v794
  %v999 = vsel %vm988, %v982, %v796
  %v1000 = vsel %vm988, %v983, %v798
  %v1001 = vsel %vm988, %v984, %v800
  %v1002 = vsel %vm988, %v985, %v802
  %v1003 = vsel %vm988, %v986, %v804
  %v1004 = vsel %vm988, %v987, %v806
  %vm1005 = vcmask 261120
  %v1006 = vsel %vm1005, %v989, %v840
  %v1007 = vsel %vm1005, %v990, %v842
  %v1008 = vsel %vm1005, %v991, %v844
  %v1009 = vsel %vm1005, %v992, %v846
  %v1010 = vsel %vm1005, %v993, %v848
  %v1011 = vsel %vm1005, %v994, %v850
  %v1012 = vsel %vm1005, %v995, %v852
  %v1013 = vsel %vm1005, %v996, %v854
  %v1014 = vsel %vm1005, %v997, %v856
  %v1015 = vsel %vm1005, %v998, %v858
  %v1016 = vsel %vm1005, %v999, %v860
  %v1017 = vsel %vm1005, %v1000, %v862
  %v1018 = vsel %vm1005, %v1001, %v864
  %v1019 = vsel %vm1005, %v1002, %v866
  %v1020 = vsel %vm1005, %v1003, %v868
  %v1021 = vsel %vm1005, %v1004, %v870
  %vm1022 = vcmask 293888
  %v1024 = vsel %vm1022, %v1006, 0
  %v1027 = vsel %vm1022, %v1007, 0
  %v1030 = vsel %vm1022, %v1008, 0
  %v1033 = vsel %vm1022, %v1009, 0
  %v1036 = vsel %vm1022, %v1010, 0
  %v1039 = vsel %vm1022, %v1011, 0
  %v1042 = vsel %vm1022, %v1012, 0
  %v1045 = vsel %vm1022, %v1013, 0
  %v1048 = vsel %vm1022, %v1014, 0
  %v1051 = vsel %vm1022, %v1015, 0
  %v1054 = vsel %vm1022, %v1016, 0
  %v1057 = vsel %vm1022, %v1017, 0
  %v1060 = vsel %vm1022, %v1018, 0
  %v1063 = vsel %vm1022, %v1019, 0
  %v1066 = vsel %vm1022, %v1020, 0
  %v1069 = vsel %vm1022, %v1021, 0
  %vm1071 = vcmask 1043456
  %v1073 = vsel %vm1071, %v158, 0
  %1075 = vmatpush.msra.mxu0 0.0
  %1076 = vmatpush.msra.mxu0 0.0
  %1077 = vmatpush.msra.mxu0 0.0
  %1078 = vmatpush.msra.mxu0 0.0
  %1079 = vmatpush.msra.mxu0 0.0
  %1080 = vmatpush.msra.mxu0 0.0
  %1081 = vmatpush.msra.mxu0 0.0
  %1082 = vmatpush.msra.mxu0 0.0
  %1083 = vmatpush.msra.mxu0 0.0
  %1084 = vmatpush.msra.mxu0 0.0
  %1085 = vmatpush.msra.mxu0 0.0
  %1086 = vmatpush.msra.mxu0 %v1073
  %1087 = vmatpush.msra.mxu0 %v157
  %1088 = vmatpush.msra.mxu0 %v156
  %1089 = vmatpush.msra.mxu0 %v155
  %1090 = vmatpush.msra.mxu0 %v154
  %1091 = vmatmul.f32.gmra.mxu0 %v1024
  %v1092 = vpop.f32.mrf.mxu0
  %v1093 = vadd.f32 0.0, %v1092
  %1094 = vmatmul.f32.gmra.mxu0 %v1027
  %v1095 = vpop.f32.mrf.mxu0
  %v1096 = vadd.f32 0.0, %v1095
  %1097 = vmatmul.f32.gmra.mxu0 %v1030
  %v1098 = vpop.f32.mrf.mxu0
  %v1099 = vadd.f32 0.0, %v1098
  %1100 = vmatmul.f32.gmra.mxu0 %v1033
  %v1101 = vpop.f32.mrf.mxu0
  %v1102 = vadd.f32 0.0, %v1101
  %1103 = vmatmul.f32.gmra.mxu0 %v1036
  %v1104 = vpop.f32.mrf.mxu0
  %v1105 = vadd.f32 0.0, %v1104
  %1106 = vmatmul.f32.gmra.mxu0 %v1039
  %v1107 = vpop.f32.mrf.mxu0
  %v1108 = vadd.f32 0.0, %v1107
  %1109 = vmatmul.f32.gmra.mxu0 %v1042
  %v1110 = vpop.f32.mrf.mxu0
  %v1111 = vadd.f32 0.0, %v1110
  %1112 = vmatmul.f32.gmra.mxu0 %v1045
  %v1113 = vpop.f32.mrf.mxu0
  %v1114 = vadd.f32 0.0, %v1113
  %1115 = vmatmul.f32.gmra.mxu0 %v1048
  %v1116 = vpop.f32.mrf.mxu0
  %v1117 = vadd.f32 0.0, %v1116
  %1118 = vmatmul.f32.gmra.mxu0 %v1051
  %v1119 = vpop.f32.mrf.mxu0
  %v1120 = vadd.f32 0.0, %v1119
  %1121 = vmatmul.f32.gmra.mxu0 %v1054
  %v1122 = vpop.f32.mrf.mxu0
  %v1123 = vadd.f32 0.0, %v1122
  %1124 = vmatmul.f32.gmra.mxu0 %v1057
  %v1125 = vpop.f32.mrf.mxu0
  %v1126 = vadd.f32 0.0, %v1125
  %1127 = vmatmul.f32.gmra.mxu0 %v1060
  %v1128 = vpop.f32.mrf.mxu0
  %v1129 = vadd.f32 0.0, %v1128
  %1130 = vmatmul.f32.gmra.mxu0 %v1063
  %v1131 = vpop.f32.mrf.mxu0
  %v1132 = vadd.f32 0.0, %v1131
  %1133 = vmatmul.f32.gmra.mxu0 %v1066
  %v1134 = vpop.f32.mrf.mxu0
  %v1135 = vadd.f32 0.0, %v1134
  %1136 = vmatmul.f32.gmra.mxu0 %v1069
  %v1137 = vpop.f32.mrf.mxu0
  %v1138 = vadd.f32 0.0, %v1137
  %1139 = vdwg.mxu0
  %v1140 = vsel %vm903, %v1093, 0.0
  %v1141 = vsel %vm903, %v1096, 0.0
  %v1142 = vadd.f32 %v1140, %v1141
  %v1143 = vsel %vm903, %v1099, 0.0
  %v1144 = vadd.f32 %v1142, %v1143
  %v1145 = vsel %vm903, %v1102, 0.0
  %v1146 = vadd.f32 %v1144, %v1145
  %v1147 = vsel %vm903, %v1105, 0.0
  %v1148 = vadd.f32 %v1146, %v1147
  %v1149 = vsel %vm903, %v1108, 0.0
  %v1150 = vadd.f32 %v1148, %v1149
  %v1151 = vsel %vm903, %v1111, 0.0
  %v1152 = vadd.f32 %v1150, %v1151
  %v1153 = vsel %vm903, %v1114, 0.0
  %v1154 = vadd.f32 %v1152, %v1153
  %v1155 = vsel %vm903, %v1117, 0.0
  %v1156 = vadd.f32 %v1154, %v1155
  %v1157 = vsel %vm903, %v1120, 0.0
  %v1158 = vadd.f32 %v1156, %v1157
  %v1159 = vsel %vm903, %v1123, 0.0
  %v1160 = vadd.f32 %v1158, %v1159
  %v1161 = vsel %vm903, %v1126, 0.0
  %v1162 = vadd.f32 %v1160, %v1161
  %v1163 = vsel %vm903, %v1129, 0.0
  %v1164 = vadd.f32 %v1162, %v1163
  %v1165 = vsel %vm903, %v1132, 0.0
  %v1166 = vadd.f32 %v1164, %v1165
  %v1167 = vsel %vm903, %v1135, 0.0
  %v1168 = vadd.f32 %v1166, %v1167
  %v1169 = vsel %vm903, %v1138, 0.0
  %v1170 = vadd.f32 %v1168, %v1169
  %v1171 = vrot.slane %v1170, 4
  %v1172 = vadd.f32 %v1170, %v1171
  %v1173 = vrot.slane %v1172, 2
  %v1174 = vadd.f32 %v1172, %v1173
  %v1175 = vrot.slane %v1174, 1
  %v1176 = vadd.f32 %v1174, %v1175
  %v1177 = vmul.f32 %v1176, 0.0078125
  %v1178 = vmul.f32 %v1093, %v1093
  %v1179 = vmul.f32 %v1096, %v1096
  %v1180 = vmul.f32 %v1099, %v1099
  %v1181 = vmul.f32 %v1102, %v1102
  %v1182 = vmul.f32 %v1105, %v1105
  %v1183 = vmul.f32 %v1108, %v1108
  %v1184 = vmul.f32 %v1111, %v1111
  %v1185 = vmul.f32 %v1114, %v1114
  %v1186 = vmul.f32 %v1117, %v1117
  %v1187 = vmul.f32 %v1120, %v1120
  %v1188 = vmul.f32 %v1123, %v1123
  %v1189 = vmul.f32 %v1126, %v1126
  %v1190 = vmul.f32 %v1129, %v1129
  %v1191 = vmul.f32 %v1132, %v1132
  %v1192 = vmul.f32 %v1135, %v1135
  %v1193 = vmul.f32 %v1138, %v1138
  %v1194 = vsel %vm903, %v1178, 0.0
  %v1195 = vsel %vm903, %v1179, 0.0
  %v1196 = vadd.f32 %v1194, %v1195
  %v1197 = vsel %vm903, %v1180, 0.0
  %v1198 = vadd.f32 %v1196, %v1197
  %v1199 = vsel %vm903, %v1181, 0.0
  %v1200 = vadd.f32 %v1198, %v1199
  %v1201 = vsel %vm903, %v1182, 0.0
  %v1202 = vadd.f32 %v1200, %v1201
  %v1203 = vsel %vm903, %v1183, 0.0
  %v1204 = vadd.f32 %v1202, %v1203
  %v1205 = vsel %vm903, %v1184, 0.0
  %v1206 = vadd.f32 %v1204, %v1205
  %v1207 = vsel %vm903, %v1185, 0.0
  %v1208 = vadd.f32 %v1206, %v1207
  %v1209 = vsel %vm903, %v1186, 0.0
  %v1210 = vadd.f32 %v1208, %v1209
  %v1211 = vsel %vm903, %v1187, 0.0
  %v1212 = vadd.f32 %v1210, %v1211
  %v1213 = vsel %vm903, %v1188, 0.0
  %v1214 = vadd.f32 %v1212, %v1213
  %v1215 = vsel %vm903, %v1189, 0.0
  %v1216 = vadd.f32 %v1214, %v1215
  %v1217 = vsel %vm903, %v1190, 0.0
  %v1218 = vadd.f32 %v1216, %v1217
  %v1219 = vsel %vm903, %v1191, 0.0
  %v1220 = vadd.f32 %v1218, %v1219
  %v1221 = vsel %vm903, %v1192, 0.0
  %v1222 = vadd.f32 %v1220, %v1221
  %v1223 = vsel %vm903, %v1193, 0.0
  %v1224 = vadd.f32 %v1222, %v1223
  %v1225 = vrot.slane %v1224, 4
  %v1226 = vadd.f32 %v1224, %v1225
  %v1227 = vrot.slane %v1226, 2
  %v1228 = vadd.f32 %v1226, %v1227
  %v1229 = vrot.slane %v1228, 1
  %v1230 = vadd.f32 %v1228, %v1229
  %v1231 = vmul.f32 %v1230, 0.0078125
  %v1232 = vmul.f32 %v1177, %v1177
  %v1233 = vsub.f32 %v1231, %v1232
  %v1234 = vadd.f32 %v1233, 1e-05
  %v1235 = vrsqrt.pop %v1234
  %v1236 = vmul.f32 %v1235, %v1234
  %v1237 = vmul.f32 %v1236, %v1235
  %v1238 = vmul.f32 0.5, %v1237
  %v1239 = vsub.f32 1.5, %v1238
  %v1240 = vmul.f32 %v1235, %v1239
  %vm1241 = vweird.f32 %v1234
  %vm1242 = vweird.f32 %v1235
  %vm1243 = vmor %vm1241, %vm1242
  %v1244 = vsel %vm1243, %v1235, %v1240
  %v1245 = vmul.f32 %v159, %v1244
  %v1246 = vmul.f32 %v1177, %v1245
  %v1247 = vsub.f32 %v160, %v1246
  %v1249 = vperm.slane %v1245, 0
  %v1251 = vmul.f32 %v1093, %v1249
  %v1252 = vmul.f32 %v1096, %v1249
  %v1253 = vmul.f32 %v1099, %v1249
  %v1254 = vmul.f32 %v1102, %v1249
  %v1255 = vmul.f32 %v1105, %v1249
  %v1256 = vmul.f32 %v1108, %v1249
  %v1257 = vmul.f32 %v1111, %v1249
  %v1258 = vmul.f32 %v1114, %v1249
  %v1259 = vmul.f32 %v1117, %v1249
  %v1260 = vmul.f32 %v1120, %v1249
  %v1261 = vmul.f32 %v1123, %v1249
  %v1262 = vmul.f32 %v1126, %v1249
  %v1263 = vmul.f32 %v1129, %v1249
  %v1264 = vmul.f32 %v1132, %v1249
  %v1265 = vmul.f32 %v1135, %v1249
  %v1266 = vmul.f32 %v1138, %v1249
  %v1268 = vperm.slane %v1247, 0
  %v1270 = vadd.f32 %v1251, %v1268
  %v1271 = vadd.f32 %v1252, %v1268
  %v1272 = vadd.f32 %v1253, %v1268
  %v1273 = vadd.f32 %v1254, %v1268
  %v1274 = vadd.f32 %v1255, %v1268
  %v1275 = vadd.f32 %v1256, %v1268
  %v1276 = vadd.f32 %v1257, %v1268
  %v1277 = vadd.f32 %v1258, %v1268
  %v1278 = vadd.f32 %v1259, %v1268
  %v1279 = vadd.f32 %v1260, %v1268
  %v1280 = vadd.f32 %v1261, %v1268
  %v1281 = vadd.f32 %v1262, %v1268
  %v1282 = vadd.f32 %v1263, %v1268
  %v1283 = vadd.f32 %v1264, %v1268
  %v1284 = vadd.f32 %v1265, %v1268
  %v1285 = vadd.f32 %v1266, %v1268
  %v1286 = vmax.f32 %v1270, 0.0
  %v1287 = vmax.f32 %v1271, 0.0
  %v1288 = vmax.f32 %v1272, 0.0
  %v1289 = vmax.f32 %v1273, 0.0
  %v1290 = vmax.f32 %v1274, 0.0
  %v1291 = vmax.f32 %v1275, 0.0
  %v1292 = vmax.f32 %v1276, 0.0
  %v1293 = vmax.f32 %v1277, 0.0
  %v1294 = vmax.f32 %v1278, 0.0
  %v1295 = vmax.f32 %v1279, 0.0
  %v1296 = vmax.f32 %v1280, 0.0
  %v1297 = vmax.f32 %v1281, 0.0
  %v1298 = vmax.f32 %v1282, 0.0
  %v1299 = vmax.f32 %v1283, 0.0
  %v1300 = vmax.f32 %v1284, 0.0
  %v1301 = vmax.f32 %v1285, 0.0
  %v1302 = vld [vmem:[%s4] sm:$0xff]
  %v1303 = vld [vmem:[%s4 + $0x8] sm:$0xff]
  %v1304 = vld [vmem:[%s4 + $0x10] sm:$0xff]
  %v1305 = vld [vmem:[%s4 + $0x18] sm:$0xff]
  %v1306 = vld [vmem:[%s4 + $0x20] sm:$0xff]
  %v1307 = vld [vmem:[%s4 + $0x28] sm:$0xff]
  %v1308 = vld [vmem:[%s4 + $0x30] sm:$0xff]
  %v1309 = vld [vmem:[%s4 + $0x38] sm:$0xff]
  %v1310 = vld [vmem:[%s4 + $0x40] sm:$0xff]
  %v1311 = vld [vmem:[%s5] sm:$0x1]
  %v1312 = vld [vmem:[%s6] sm:$0x1]
  %s1313 = scalar_lea.vmem [#allocation3], 16
  %1314 = vst.msk [vmem:[%s1313 + $0x1] sm:$0xff] %vm903, %v1286
  %1315 = vst.msk [vmem:[%s1313 + $0x11] sm:$0xff] %vm903, %v1287
  %1316 = vst.msk [vmem:[%s1313 + $0x21] sm:$0xff] %vm903, %v1288
  %1317 = vst.msk [vmem:[%s1313 + $0x31] sm:$0xff] %vm903, %v1289
  %1318 = vst.msk [vmem:[%s1313 + $0x41] sm:$0xff] %vm903, %v1290
  %1319 = vst.msk [vmem:[%s1313 + $0x51] sm:$0xff] %vm903, %v1291
  %1320 = vst.msk [vmem:[%s1313 + $0x61] sm:$0xff] %vm903, %v1292
  %1321 = vst.msk [vmem:[%s1313 + $0x71] sm:$0xff] %vm903, %v1293
  %1322 = vst.msk [vmem:[%s1313 + $0xa1] sm:$0xff] %vm903, %v1294
  %1323 = vst.msk [vmem:[%s1313 + $0xb1] sm:$0xff] %vm903, %v1295
  %1324 = vst.msk [vmem:[%s1313 + $0xc1] sm:$0xff] %vm903, %v1296
  %1325 = vst.msk [vmem:[%s1313 + $0xd1] sm:$0xff] %vm903, %v1297
  %1326 = vst.msk [vmem:[%s1313 + $0xe1] sm:$0xff] %vm903, %v1298
  %1327 = vst.msk [vmem:[%s1313 + $0xf1] sm:$0xff] %vm903, %v1299
  %1328 = vst.msk [vmem:[%s1313 + $0x101] sm:$0xff] %vm903, %v1300
  %1329 = vst.msk [vmem:[%s1313 + $0x111] sm:$0xff] %vm903, %v1301
  %1330 = vst.msk [vmem:[#allocation3] sm:$0xff] %vm903, 0.0
  %vm1331 = vcmask 58368
  %1332 = vst.msk [vmem:[#allocation3 + $0x8] sm:$0x3] %vm1331, 0.0
  %1333 = vst.msk [vmem:[#allocation3 + $0xa0] sm:$0xff] %vm903, 0.0
  %1334 = vst.msk [vmem:[#allocation3 + $0xa8] sm:$0x3] %vm1331, 0.0
  %s1335 = scalar_lea.vmem [#allocation3], 144
  %1336 = vst.msk [vmem:[%s1335] sm:$0xff] %vm903, 0.0
  %1337 = vst.msk [vmem:[%s1335 + $0x8] sm:$0x3] %vm1331, 0.0
  %1338 = vst.msk [vmem:[%s1335 + $0xa0] sm:$0xff] %vm903, 0.0
  %1339 = vst.msk [vmem:[%s1335 + $0xa8] sm:$0x3] %vm1331, 0.0
  %vm1340 = vcmask 57344
  %1341 = vst.msk [vmem:[#allocation3] sm:$0x1] %vm1340, 0.0
  %1342 = vst.msk [vmem:[#allocation3 + $0x10] sm:$0x1] %vm1340, 0.0
  %1343 = vst.msk [vmem:[#allocation3 + $0x20] sm:$0x1] %vm1340, 0.0
  %1344 = vst.msk [vmem:[#allocation3 + $0x30] sm:$0x1] %vm1340, 0.0
  %1345 = vst.msk [vmem:[#allocation3 + $0x40] sm:$0x1] %vm1340, 0.0
  %1346 = vst.msk [vmem:[#allocation3 + $0x50] sm:$0x1] %vm1340, 0.0
  %1347 = vst.msk [vmem:[#allocation3 + $0x60] sm:$0x1] %vm1340, 0.0
  %1348 = vst.msk [vmem:[#allocation3 + $0x70] sm:$0x1] %vm1340, 0.0
  %1349 = vst.msk [vmem:[#allocation3 + $0x80] sm:$0x1] %vm1340, 0.0
  %1350 = vst.msk [vmem:[#allocation3 + $0x90] sm:$0x1] %vm1340, 0.0
  %1351 = vst.msk [vmem:[#allocation3 + $0xa0] sm:$0x1] %vm1340, 0.0
  %1352 = vst.msk [vmem:[#allocation3 + $0xb0] sm:$0x1] %vm1340, 0.0
  %1353 = vst.msk [vmem:[#allocation3 + $0xc0] sm:$0x1] %vm1340, 0.0
  %1354 = vst.msk [vmem:[#allocation3 + $0xd0] sm:$0x1] %vm1340, 0.0
  %1355 = vst.msk [vmem:[#allocation3 + $0xe0] sm:$0x1] %vm1340, 0.0
  %1356 = vst.msk [vmem:[#allocation3 + $0xf0] sm:$0x1] %vm1340, 0.0
  %1357 = vst.msk [vmem:[#allocation3 + $0x100] sm:$0x1] %vm1340, 0.0
  %1358 = vst.msk [vmem:[#allocation3 + $0x110] sm:$0x1] %vm1340, 0.0
  %1359 = vst.msk [vmem:[#allocation3 + $0x120] sm:$0x1] %vm1340, 0.0
  %1360 = vst.msk [vmem:[#allocation3 + $0x130] sm:$0x1] %vm1340, 0.0
  %1361 = vst.msk [vmem:[#allocation3 + $0x9] sm:$0x1] %vm1340, 0.0
  %1362 = vst.msk [vmem:[#allocation3 + $0x19] sm:$0x1] %vm1340, 0.0
  %1363 = vst.msk [vmem:[#allocation3 + $0x29] sm:$0x1] %vm1340, 0.0
  %1364 = vst.msk [vmem:[#allocation3 + $0x39] sm:$0x1] %vm1340, 0.0
  %1365 = vst.msk [vmem:[#allocation3 + $0x49] sm:$0x1] %vm1340, 0.0
  %1366 = vst.msk [vmem:[#allocation3 + $0x59] sm:$0x1] %vm1340, 0.0
  %1367 = vst.msk [vmem:[#allocation3 + $0x69] sm:$0x1] %vm1340, 0.0
  %1368 = vst.msk [vmem:[#allocation3 + $0x79] sm:$0x1] %vm1340, 0.0
  %1369 = vst.msk [vmem:[#allocation3 + $0x89] sm:$0x1] %vm1340, 0.0
  %1370 = vst.msk [vmem:[#allocation3 + $0x99] sm:$0x1] %vm1340, 0.0
  %1371 = vst.msk [vmem:[#allocation3 + $0xa9] sm:$0x1] %vm1340, 0.0
  %1372 = vst.msk [vmem:[#allocation3 + $0xb9] sm:$0x1] %vm1340, 0.0
  %1373 = vst.msk [vmem:[#allocation3 + $0xc9] sm:$0x1] %vm1340, 0.0
  %1374 = vst.msk [vmem:[#allocation3 + $0xd9] sm:$0x1] %vm1340, 0.0
  %1375 = vst.msk [vmem:[#allocation3 + $0xe9] sm:$0x1] %vm1340, 0.0
  %1376 = vst.msk [vmem:[#allocation3 + $0xf9] sm:$0x1] %vm1340, 0.0
  %1377 = vst.msk [vmem:[#allocation3 + $0x109] sm:$0x1] %vm1340, 0.0
  %1378 = vst.msk [vmem:[#allocation3 + $0x119] sm:$0x1] %vm1340, 0.0
  %1379 = vst.msk [vmem:[#allocation3 + $0x129] sm:$0x1] %vm1340, 0.0
  %1380 = vst.msk [vmem:[#allocation3 + $0x139] sm:$0x1] %vm1340, 0.0
  %v1381 = vld [vmem:[#allocation3] sm:$0xff]
  %v1382 = vld [vmem:[#allocation3 + $0x10] sm:$0xff]
  %v1383 = vld [vmem:[#allocation3 + $0x20] sm:$0xff]
  %v1384 = vld [vmem:[#allocation3 + $0x30] sm:$0xff]
  %v1385 = vld [vmem:[#allocation3 + $0x40] sm:$0xff]
  %v1386 = vld [vmem:[#allocation3 + $0x50] sm:$0xff]
  %v1387 = vld [vmem:[#allocation3 + $0x60] sm:$0xff]
  %v1388 = vld [vmem:[#allocation3 + $0x70] sm:$0xff]
  %v1389 = vld [vmem:[#allocation3 + $0xa0] sm:$0xff]
  %v1390 = vld [vmem:[#allocation3 + $0xb0] sm:$0xff]
  %v1391 = vld [vmem:[#allocation3 + $0xc0] sm:$0xff]
  %v1392 = vld [vmem:[#allocation3 + $0xd0] sm:$0xff]
  %v1393 = vld [vmem:[#allocation3 + $0xe0] sm:$0xff]
  %v1394 = vld [vmem:[#allocation3 + $0xf0] sm:$0xff]
  %v1395 = vld [vmem:[#allocation3 + $0x100] sm:$0xff]
  %v1396 = vld [vmem:[#allocation3 + $0x110] sm:$0xff]
  %v1397 = vld [vmem:[#allocation3 + $0x1] sm:$0xff]
  %v1398 = vld [vmem:[#allocation3 + $0x11] sm:$0xff]
  %v1399 = vld [vmem:[#allocation3 + $0x21] sm:$0xff]
  %v1400 = vld [vmem:[#allocation3 + $0x31] sm:$0xff]
  %v1401 = vld [vmem:[#allocation3 + $0x41] sm:$0xff]
  %v1402 = vld [vmem:[#allocation3 + $0x51] sm:$0xff]
  %v1403 = vld [vmem:[#allocation3 + $0x61] sm:$0xff]
  %v1404 = vld [vmem:[#allocation3 + $0x71] sm:$0xff]
  %v1405 = vld [vmem:[#allocation3 + $0xa1] sm:$0xff]
  %v1406 = vld [vmem:[#allocation3 + $0xb1] sm:$0xff]
  %v1407 = vld [vmem:[#allocation3 + $0xc1] sm:$0xff]
  %v1408 = vld [vmem:[#allocation3 + $0xd1] sm:$0xff]
  %v1409 = vld [vmem:[#allocation3 + $0xe1] sm:$0xff]
  %v1410 = vld [vmem:[#allocation3 + $0xf1] sm:$0xff]
  %v1411 = vld [vmem:[#allocation3 + $0x101] sm:$0xff]
  %v1412 = vld [vmem:[#allocation3 + $0x111] sm:$0xff]
  %v1413 = vld [vmem:[#allocation3 + $0x2] sm:$0xff]
  %v1414 = vld [vmem:[#allocation3 + $0x12] sm:$0xff]
  %v1415 = vld [vmem:[#allocation3 + $0x22] sm:$0xff]
  %v1416 = vld [vmem:[#allocation3 + $0x32] sm:$0xff]
  %v1417 = vld [vmem:[#allocation3 + $0x42] sm:$0xff]
  %v1418 = vld [vmem:[#allocation3 + $0x52] sm:$0xff]
  %v1419 = vld [vmem:[#allocation3 + $0x62] sm:$0xff]
  %v1420 = vld [vmem:[#allocation3 + $0x72] sm:$0xff]
  %v1421 = vld [vmem:[#allocation3 + $0xa2] sm:$0xff]
  %v1422 = vld [vmem:[#allocation3 + $0xb2] sm:$0xff]
  %v1423 = vld [vmem:[#allocation3 + $0xc2] sm:$0xff]
  %v1424 = vld [vmem:[#allocation3 + $0xd2] sm:$0xff]
  %v1425 = vld [vmem:[#allocation3 + $0xe2] sm:$0xff]
  %v1426 = vld [vmem:[#allocation3 + $0xf2] sm:$0xff]
  %v1427 = vld [vmem:[#allocation3 + $0x102] sm:$0xff]
  %v1428 = vld [vmem:[#allocation3 + $0x112] sm:$0xff]
  %v1429 = vld [vmem:[%s1313] sm:$0xff]
  %v1430 = vld [vmem:[%s1313 + $0x10] sm:$0xff]
  %v1431 = vld [vmem:[%s1313 + $0x20] sm:$0xff]
  %v1432 = vld [vmem:[%s1313 + $0x30] sm:$0xff]
  %v1433 = vld [vmem:[%s1313 + $0x40] sm:$0xff]
  %v1434 = vld [vmem:[%s1313 + $0x50] sm:$0xff]
  %v1435 = vld [vmem:[%s1313 + $0x60] sm:$0xff]
  %v1436 = vld [vmem:[%s1313 + $0x70] sm:$0xff]
  %v1437 = vld [vmem:[%s1313 + $0xa0] sm:$0xff]
  %v1438 = vld [vmem:[%s1313 + $0xb0] sm:$0xff]
  %v1439 = vld [vmem:[%s1313 + $0xc0] sm:$0xff]
  %v1440 = vld [vmem:[%s1313 + $0xd0] sm:$0xff]
  %v1441 = vld [vmem:[%s1313 + $0xe0] sm:$0xff]
  %v1442 = vld [vmem:[%s1313 + $0xf0] sm:$0xff]
  %v1443 = vld [vmem:[%s1313 + $0x100] sm:$0xff]
  %v1444 = vld [vmem:[%s1313 + $0x110] sm:$0xff]
  %v1445 = vld [vmem:[%s1313 + $0x1] sm:$0xff]
  %v1446 = vld [vmem:[%s1313 + $0x11] sm:$0xff]
  %v1447 = vld [vmem:[%s1313 + $0x21] sm:$0xff]
  %v1448 = vld [vmem:[%s1313 + $0x31] sm:$0xff]
  %v1449 = vld [vmem:[%s1313 + $0x41] sm:$0xff]
  %v1450 = vld [vmem:[%s1313 + $0x51] sm:$0xff]
  %v1451 = vld [vmem:[%s1313 + $0x61] sm:$0xff]
  %v1452 = vld [vmem:[%s1313 + $0x71] sm:$0xff]
  %v1453 = vld [vmem:[%s1313 + $0xa1] sm:$0xff]
  %v1454 = vld [vmem:[%s1313 + $0xb1] sm:$0xff]
  %v1455 = vld [vmem:[%s1313 + $0xc1] sm:$0xff]
  %v1456 = vld [vmem:[%s1313 + $0xd1] sm:$0xff]
  %v1457 = vld [vmem:[%s1313 + $0xe1] sm:$0xff]
  %v1458 = vld [vmem:[%s1313 + $0xf1] sm:$0xff]
  %v1459 = vld [vmem:[%s1313 + $0x101] sm:$0xff]
  %v1460 = vld [vmem:[%s1313 + $0x111] sm:$0xff]
  %v1461 = vld [vmem:[%s1313 + $0x2] sm:$0xff]
  %v1462 = vld [vmem:[%s1313 + $0x12] sm:$0xff]
  %v1463 = vld [vmem:[%s1313 + $0x22] sm:$0xff]
  %v1464 = vld [vmem:[%s1313 + $0x32] sm:$0xff]
  %v1465 = vld [vmem:[%s1313 + $0x42] sm:$0xff]
  %v1466 = vld [vmem:[%s1313 + $0x52] sm:$0xff]
  %v1467 = vld [vmem:[%s1313 + $0x62] sm:$0xff]
  %v1468 = vld [vmem:[%s1313 + $0x72] sm:$0xff]
  %v1469 = vld [vmem:[%s1313 + $0xa2] sm:$0xff]
  %v1470 = vld [vmem:[%s1313 + $0xb2] sm:$0xff]
  %v1471 = vld [vmem:[%s1313 + $0xc2] sm:$0xff]
  %v1472 = vld [vmem:[%s1313 + $0xd2] sm:$0xff]
  %v1473 = vld [vmem:[%s1313 + $0xe2] sm:$0xff]
  %v1474 = vld [vmem:[%s1313 + $0xf2] sm:$0xff]
  %v1475 = vld [vmem:[%s1313 + $0x102] sm:$0xff]
  %v1476 = vld [vmem:[%s1313 + $0x112] sm:$0xff]
  %s1477 = scalar_lea.vmem [#allocation3], 32
  %v1478 = vld [vmem:[%s1477] sm:$0xff]
  %v1479 = vld [vmem:[%s1477 + $0x10] sm:$0xff]
  %v1480 = vld [vmem:[%s1477 + $0x20] sm:$0xff]
  %v1481 = vld [vmem:[%s1477 + $0x30] sm:$0xff]
  %v1482 = vld [vmem:[%s1477 + $0x40] sm:$0xff]
  %v1483 = vld [vmem:[%s1477 + $0x50] sm:$0xff]
  %v1484 = vld [vmem:[%s1477 + $0x60] sm:$0xff]
  %v1485 = vld [vmem:[%s1477 + $0x70] sm:$0xff]
  %v1486 = vld [vmem:[%s1477 + $0xa0] sm:$0xff]
  %v1487 = vld [vmem:[%s1477 + $0xb0] sm:$0xff]
  %v1488 = vld [vmem:[%s1477 + $0xc0] sm:$0xff]
  %v1489 = vld [vmem:[%s1477 + $0xd0] sm:$0xff]
  %v1490 = vld [vmem:[%s1477 + $0xe0] sm:$0xff]
  %v1491 = vld [vmem:[%s1477 + $0xf0] sm:$0xff]
  %v1492 = vld [vmem:[%s1477 + $0x100] sm:$0xff]
  %v1493 = vld [vmem:[%s1477 + $0x110] sm:$0xff]
  %v1494 = vld [vmem:[%s1477 + $0x1] sm:$0xff]
  %v1495 = vld [vmem:[%s1477 + $0x11] sm:$0xff]
  %v1496 = vld [vmem:[%s1477 + $0x21] sm:$0xff]
  %v1497 = vld [vmem:[%s1477 + $0x31] sm:$0xff]
  %v1498 = vld [vmem:[%s1477 + $0x41] sm:$0xff]
  %v1499 = vld [vmem:[%s1477 + $0x51] sm:$0xff]
  %v1500 = vld [vmem:[%s1477 + $0x61] sm:$0xff]
  %v1501 = vld [vmem:[%s1477 + $0x71] sm:$0xff]
  %v1502 = vld [vmem:[%s1477 + $0xa1] sm:$0xff]
  %v1503 = vld [vmem:[%s1477 + $0xb1] sm:$0xff]
  %v1504 = vld [vmem:[%s1477 + $0xc1] sm:$0xff]
  %v1505 = vld [vmem:[%s1477 + $0xd1] sm:$0xff]
  %v1506 = vld [vmem:[%s1477 + $0xe1] sm:$0xff]
  %v1507 = vld [vmem:[%s1477 + $0xf1] sm:$0xff]
  %v1508 = vld [vmem:[%s1477 + $0x101] sm:$0xff]
  %v1509 = vld [vmem:[%s1477 + $0x111] sm:$0xff]
  %v1510 = vld [vmem:[%s1477 + $0x2] sm:$0xff]
  %v1511 = vld [vmem:[%s1477 + $0x12] sm:$0xff]
  %v1512 = vld [vmem:[%s1477 + $0x22] sm:$0xff]
  %v1513 = vld [vmem:[%s1477 + $0x32] sm:$0xff]
  %v1514 = vld [vmem:[%s1477 + $0x42] sm:$0xff]
  %v1515 = vld [vmem:[%s1477 + $0x52] sm:$0xff]
  %v1516 = vld [vmem:[%s1477 + $0x62] sm:$0xff]
  %v1517 = vld [vmem:[%s1477 + $0x72] sm:$0xff]
  %v1518 = vld [vmem:[%s1477 + $0xa2] sm:$0xff]
  %v1519 = vld [vmem:[%s1477 + $0xb2] sm:$0xff]
  %v1520 = vld [vmem:[%s1477 + $0xc2] sm:$0xff]
  %v1521 = vld [vmem:[%s1477 + $0xd2] sm:$0xff]
  %v1522 = vld [vmem:[%s1477 + $0xe2] sm:$0xff]
  %v1523 = vld [vmem:[%s1477 + $0xf2] sm:$0xff]
  %v1524 = vld [vmem:[%s1477 + $0x102] sm:$0xff]
  %v1525 = vld [vmem:[%s1477 + $0x112] sm:$0xff]
  %1542 = vrot.lane.b32.xlu0 %v1397, 8
  %v1543 = vpop.permute.xlu0 %1542
  %1544 = vrot.lane.b32.xlu0 %v1398, 8
  %v1545 = vpop.permute.xlu0 %1544
  %1546 = vrot.lane.b32.xlu0 %v1399, 8
  %v1547 = vpop.permute.xlu0 %1546
  %1548 = vrot.lane.b32.xlu0 %v1400, 8
  %v1549 = vpop.permute.xlu0 %1548
  %1550 = vrot.lane.b32.xlu0 %v1401, 8
  %v1551 = vpop.permute.xlu0 %1550
  %1552 = vrot.lane.b32.xlu0 %v1402, 8
  %v1553 = vpop.permute.xlu0 %1552
  %1554 = vrot.lane.b32.xlu0 %v1403, 8
  %v1555 = vpop.permute.xlu0 %1554
  %1556 = vrot.lane.b32.xlu0 %v1404, 8
  %v1557 = vpop.permute.xlu0 %1556
  %1558 = vrot.lane.b32.xlu0 %v1405, 8
  %v1559 = vpop.permute.xlu0 %1558
  %1560 = vrot.lane.b32.xlu0 %v1406, 8
  %v1561 = vpop.permute.xlu0 %1560
  %1562 = vrot.lane.b32.xlu0 %v1407, 8
  %v1563 = vpop.permute.xlu0 %1562
  %1564 = vrot.lane.b32.xlu0 %v1408, 8
  %v1565 = vpop.permute.xlu0 %1564
  %1566 = vrot.lane.b32.xlu0 %v1409, 8
  %v1567 = vpop.permute.xlu0 %1566
  %1568 = vrot.lane.b32.xlu0 %v1410, 8
  %v1569 = vpop.permute.xlu0 %1568
  %1570 = vrot.lane.b32.xlu0 %v1411, 8
  %v1571 = vpop.permute.xlu0 %1570
  %1572 = vrot.lane.b32.xlu0 %v1412, 8
  %v1573 = vpop.permute.xlu0 %1572
  %1606 = vrot.lane.b32.xlu0 %v1413, 16
  %v1607 = vpop.permute.xlu0 %1606
  %1608 = vrot.lane.b32.xlu0 %v1414, 16
  %v1609 = vpop.permute.xlu0 %1608
  %1610 = vrot.lane.b32.xlu0 %v1415, 16
  %v1611 = vpop.permute.xlu0 %1610
  %1612 = vrot.lane.b32.xlu0 %v1416, 16
  %v1613 = vpop.permute.xlu0 %1612
  %1614 = vrot.lane.b32.xlu0 %v1417, 16
  %v1615 = vpop.permute.xlu0 %1614
  %1616 = vrot.lane.b32.xlu0 %v1418, 16
  %v1617 = vpop.permute.xlu0 %1616
  %1618 = vrot.lane.b32.xlu0 %v1419, 16
  %v1619 = vpop.permute.xlu0 %1618
  %1620 = vrot.lane.b32.xlu0 %v1420, 16
  %v1621 = vpop.permute.xlu0 %1620
  %1622 = vrot.lane.b32.xlu0 %v1421, 16
  %v1623 = vpop.permute.xlu0 %1622
  %1624 = vrot.lane.b32.xlu0 %v1422, 16
  %v1625 = vpop.permute.xlu0 %1624
  %1626 = vrot.lane.b32.xlu0 %v1423, 16
  %v1627 = vpop.permute.xlu0 %1626
  %1628 = vrot.lane.b32.xlu0 %v1424, 16
  %v1629 = vpop.permute.xlu0 %1628
  %1630 = vrot.lane.b32.xlu0 %v1425, 16
  %v1631 = vpop.permute.xlu0 %1630
  %1632 = vrot.lane.b32.xlu0 %v1426, 16
  %v1633 = vpop.permute.xlu0 %1632
  %1634 = vrot.lane.b32.xlu0 %v1427, 16
  %v1635 = vpop.permute.xlu0 %1634
  %1636 = vrot.lane.b32.xlu0 %v1428, 16
  %v1637 = vpop.permute.xlu0 %1636
  %1670 = vrot.lane.b32.xlu0 %v1429, 24
  %v1671 = vpop.permute.xlu0 %1670
  %1672 = vrot.lane.b32.xlu0 %v1430, 24
  %v1673 = vpop.permute.xlu0 %1672
  %1674 = vrot.lane.b32.xlu0 %v1431, 24
  %v1675 = vpop.permute.xlu0 %1674
  %1676 = vrot.lane.b32.xlu0 %v1432, 24
  %v1677 = vpop.permute.xlu0 %1676
  %1678 = vrot.lane.b32.xlu0 %v1433, 24
  %v1679 = vpop.permute.xlu0 %1678
  %1680 = vrot.lane.b32.xlu0 %v1434, 24
  %v1681 = vpop.permute.xlu0 %1680
  %1682 = vrot.lane.b32.xlu0 %v1435, 24
  %v1683 = vpop.permute.xlu0 %1682
  %1684 = vrot.lane.b32.xlu0 %v1436, 24
  %v1685 = vpop.permute.xlu0 %1684
  %1686 = vrot.lane.b32.xlu0 %v1437, 24
  %v1687 = vpop.permute.xlu0 %1686
  %1688 = vrot.lane.b32.xlu0 %v1438, 24
  %v1689 = vpop.permute.xlu0 %1688
  %1690 = vrot.lane.b32.xlu0 %v1439, 24
  %v1691 = vpop.permute.xlu0 %1690
  %1692 = vrot.lane.b32.xlu0 %v1440, 24
  %v1693 = vpop.permute.xlu0 %1692
  %1694 = vrot.lane.b32.xlu0 %v1441, 24
  %v1695 = vpop.permute.xlu0 %1694
  %1696 = vrot.lane.b32.xlu0 %v1442, 24
  %v1697 = vpop.permute.xlu0 %1696
  %1698 = vrot.lane.b32.xlu0 %v1443, 24
  %v1699 = vpop.permute.xlu0 %1698
  %1700 = vrot.lane.b32.xlu0 %v1444, 24
  %v1701 = vpop.permute.xlu0 %1700
  %1734 = vrot.lane.b32.xlu0 %v1445, 32
  %v1735 = vpop.permute.xlu0 %1734
  %1736 = vrot.lane.b32.xlu0 %v1446, 32
  %v1737 = vpop.permute.xlu0 %1736
  %1738 = vrot.lane.b32.xlu0 %v1447, 32
  %v1739 = vpop.permute.xlu0 %1738
  %1740 = vrot.lane.b32.xlu0 %v1448, 32
  %v1741 = vpop.permute.xlu0 %1740
  %1742 = vrot.lane.b32.xlu0 %v1449, 32
  %v1743 = vpop.permute.xlu0 %1742
  %1744 = vrot.lane.b32.xlu0 %v1450, 32
  %v1745 = vpop.permute.xlu0 %1744
  %1746 = vrot.lane.b32.xlu0 %v1451, 32
  %v1747 = vpop.permute.xlu0 %1746
  %1748 = vrot.lane.b32.xlu0 %v1452, 32
  %v1749 = vpop.permute.xlu0 %1748
  %1750 = vrot.lane.b32.xlu0 %v1453, 32
  %v1751 = vpop.permute.xlu0 %1750
  %1752 = vrot.lane.b32.xlu0 %v1454, 32
  %v1753 = vpop.permute.xlu0 %1752
  %1754 = vrot.lane.b32.xlu0 %v1455, 32
  %v1755 = vpop.permute.xlu0 %1754
  %1756 = vrot.lane.b32.xlu0 %v1456, 32
  %v1757 = vpop.permute.xlu0 %1756
  %1758 = vrot.lane.b32.xlu0 %v1457, 32
  %v1759 = vpop.permute.xlu0 %1758
  %1760 = vrot.lane.b32.xlu0 %v1458, 32
  %v1761 = vpop.permute.xlu0 %1760
  %1762 = vrot.lane.b32.xlu0 %v1459, 32
  %v1763 = vpop.permute.xlu0 %1762
  %1764 = vrot.lane.b32.xlu0 %v1460, 32
  %v1765 = vpop.permute.xlu0 %1764
  %1798 = vrot.lane.b32.xlu0 %v1461, 40
  %v1799 = vpop.permute.xlu0 %1798
  %1800 = vrot.lane.b32.xlu0 %v1462, 40
  %v1801 = vpop.permute.xlu0 %1800
  %1802 = vrot.lane.b32.xlu0 %v1463, 40
  %v1803 = vpop.permute.xlu0 %1802
  %1804 = vrot.lane.b32.xlu0 %v1464, 40
  %v1805 = vpop.permute.xlu0 %1804
  %1806 = vrot.lane.b32.xlu0 %v1465, 40
  %v1807 = vpop.permute.xlu0 %1806
  %1808 = vrot.lane.b32.xlu0 %v1466, 40
  %v1809 = vpop.permute.xlu0 %1808
  %1810 = vrot.lane.b32.xlu0 %v1467, 40
  %v1811 = vpop.permute.xlu0 %1810
  %1812 = vrot.lane.b32.xlu0 %v1468, 40
  %v1813 = vpop.permute.xlu0 %1812
  %1814 = vrot.lane.b32.xlu0 %v1469, 40
  %v1815 = vpop.permute.xlu0 %1814
  %1816 = vrot.lane.b32.xlu0 %v1470, 40
  %v1817 = vpop.permute.xlu0 %1816
  %1818 = vrot.lane.b32.xlu0 %v1471, 40
  %v1819 = vpop.permute.xlu0 %1818
  %1820 = vrot.lane.b32.xlu0 %v1472, 40
  %v1821 = vpop.permute.xlu0 %1820
  %1822 = vrot.lane.b32.xlu0 %v1473, 40
  %v1823 = vpop.permute.xlu0 %1822
  %1824 = vrot.lane.b32.xlu0 %v1474, 40
  %v1825 = vpop.permute.xlu0 %1824
  %1826 = vrot.lane.b32.xlu0 %v1475, 40
  %v1827 = vpop.permute.xlu0 %1826
  %1828 = vrot.lane.b32.xlu0 %v1476, 40
  %v1829 = vpop.permute.xlu0 %1828
  %1862 = vrot.lane.b32.xlu0 %v1478, 48
  %v1863 = vpop.permute.xlu0 %1862
  %1864 = vrot.lane.b32.xlu0 %v1479, 48
  %v1865 = vpop.permute.xlu0 %1864
  %1866 = vrot.lane.b32.xlu0 %v1480, 48
  %v1867 = vpop.permute.xlu0 %1866
  %1868 = vrot.lane.b32.xlu0 %v1481, 48
  %v1869 = vpop.permute.xlu0 %1868
  %1870 = vrot.lane.b32.xlu0 %v1482, 48
  %v1871 = vpop.permute.xlu0 %1870
  %1872 = vrot.lane.b32.xlu0 %v1483, 48
  %v1873 = vpop.permute.xlu0 %1872
  %1874 = vrot.lane.b32.xlu0 %v1484, 48
  %v1875 = vpop.permute.xlu0 %1874
  %1876 = vrot.lane.b32.xlu0 %v1485, 48
  %v1877 = vpop.permute.xlu0 %1876
  %1878 = vrot.lane.b32.xlu0 %v1486, 48
  %v1879 = vpop.permute.xlu0 %1878
  %1880 = vrot.lane.b32.xlu0 %v1487, 48
  %v1881 = vpop.permute.xlu0 %1880
  %1882 = vrot.lane.b32.xlu0 %v1488, 48
  %v1883 = vpop.permute.xlu0 %1882
  %1884 = vrot.lane.b32.xlu0 %v1489, 48
  %v1885 = vpop.permute.xlu0 %1884
  %1886 = vrot.lane.b32.xlu0 %v1490, 48
  %v1887 = vpop.permute.xlu0 %1886
  %1888 = vrot.lane.b32.xlu0 %v1491, 48
  %v1889 = vpop.permute.xlu0 %1888
  %1890 = vrot.lane.b32.xlu0 %v1492, 48
  %v1891 = vpop.permute.xlu0 %1890
  %1892 = vrot.lane.b32.xlu0 %v1493, 48
  %v1893 = vpop.permute.xlu0 %1892
  %1926 = vrot.lane.b32.xlu0 %v1494, 56
  %v1927 = vpop.permute.xlu0 %1926
  %1928 = vrot.lane.b32.xlu0 %v1495, 56
  %v1929 = vpop.permute.xlu0 %1928
  %1930 = vrot.lane.b32.xlu0 %v1496, 56
  %v1931 = vpop.permute.xlu0 %1930
  %1932 = vrot.lane.b32.xlu0 %v1497, 56
  %v1933 = vpop.permute.xlu0 %1932
  %1934 = vrot.lane.b32.xlu0 %v1498, 56
  %v1935 = vpop.permute.xlu0 %1934
  %1936 = vrot.lane.b32.xlu0 %v1499, 56
  %v1937 = vpop.permute.xlu0 %1936
  %1938 = vrot.lane.b32.xlu0 %v1500, 56
  %v1939 = vpop.permute.xlu0 %1938
  %1940 = vrot.lane.b32.xlu0 %v1501, 56
  %v1941 = vpop.permute.xlu0 %1940
  %1942 = vrot.lane.b32.xlu0 %v1502, 56
  %v1943 = vpop.permute.xlu0 %1942
  %1944 = vrot.lane.b32.xlu0 %v1503, 56
  %v1945 = vpop.permute.xlu0 %1944
  %1946 = vrot.lane.b32.xlu0 %v1504, 56
  %v1947 = vpop.permute.xlu0 %1946
  %1948 = vrot.lane.b32.xlu0 %v1505, 56
  %v1949 = vpop.permute.xlu0 %1948
  %1950 = vrot.lane.b32.xlu0 %v1506, 56
  %v1951 = vpop.permute.xlu0 %1950
  %1952 = vrot.lane.b32.xlu0 %v1507, 56
  %v1953 = vpop.permute.xlu0 %1952
  %1954 = vrot.lane.b32.xlu0 %v1508, 56
  %v1955 = vpop.permute.xlu0 %1954
  %1956 = vrot.lane.b32.xlu0 %v1509, 56
  %v1957 = vpop.permute.xlu0 %1956
  %1990 = vrot.lane.b32.xlu0 %v1510, 64
  %v1991 = vpop.permute.xlu0 %1990
  %1992 = vrot.lane.b32.xlu0 %v1511, 64
  %v1993 = vpop.permute.xlu0 %1992
  %1994 = vrot.lane.b32.xlu0 %v1512, 64
  %v1995 = vpop.permute.xlu0 %1994
  %1996 = vrot.lane.b32.xlu0 %v1513, 64
  %v1997 = vpop.permute.xlu0 %1996
  %1998 = vrot.lane.b32.xlu0 %v1514, 64
  %v1999 = vpop.permute.xlu0 %1998
  %2000 = vrot.lane.b32.xlu0 %v1515, 64
  %v2001 = vpop.permute.xlu0 %2000
  %2002 = vrot.lane.b32.xlu0 %v1516, 64
  %v2003 = vpop.permute.xlu0 %2002
  %2004 = vrot.lane.b32.xlu0 %v1517, 64
  %v2005 = vpop.permute.xlu0 %2004
  %2006 = vrot.lane.b32.xlu0 %v1518, 64
  %v2007 = vpop.permute.xlu0 %2006
  %2008 = vrot.lane.b32.xlu0 %v1519, 64
  %v2009 = vpop.permute.xlu0 %2008
  %2010 = vrot.lane.b32.xlu0 %v1520, 64
  %v2011 = vpop.permute.xlu0 %2010
  %2012 = vrot.lane.b32.xlu0 %v1521, 64
  %v2013 = vpop.permute.xlu0 %2012
  %2014 = vrot.lane.b32.xlu0 %v1522, 64
  %v2015 = vpop.permute.xlu0 %2014
  %2016 = vrot.lane.b32.xlu0 %v1523, 64
  %v2017 = vpop.permute.xlu0 %2016
  %2018 = vrot.lane.b32.xlu0 %v1524, 64
  %v2019 = vpop.permute.xlu0 %2018
  %2020 = vrot.lane.b32.xlu0 %v1525, 64
  %v2021 = vpop.permute.xlu0 %2020
  %v2038 = vsel %vm903, %v1381, %v1543
  %v2039 = vsel %vm903, %v1382, %v1545
  %v2040 = vsel %vm903, %v1383, %v1547
  %v2041 = vsel %vm903, %v1384, %v1549
  %v2042 = vsel %vm903, %v1385, %v1551
  %v2043 = vsel %vm903, %v1386, %v1553
  %v2044 = vsel %vm903, %v1387, %v1555
  %v2045 = vsel %vm903, %v1388, %v1557
  %v2046 = vsel %vm903, %v1389, %v1559
  %v2047 = vsel %vm903, %v1390, %v1561
  %v2048 = vsel %vm903, %v1391, %v1563
  %v2049 = vsel %vm903, %v1392, %v1565
  %v2050 = vsel %vm903, %v1393, %v1567
  %v2051 = vsel %vm903, %v1394, %v1569
  %v2052 = vsel %vm903, %v1395, %v1571
  %v2053 = vsel %vm903, %v1396, %v1573
  %v2054 = vsel %vm937, %v2038, %v1607
  %v2055 = vsel %vm937, %v2039, %v1609
  %v2056 = vsel %vm937, %v2040, %v1611
  %v2057 = vsel %vm937, %v2041, %v1613
  %v2058 = vsel %vm937, %v2042, %v1615
  %v2059 = vsel %vm937, %v2043, %v1617
  %v2060 = vsel %vm937, %v2044, %v1619
  %v2061 = vsel %vm937, %v2045, %v1621
  %v2062 = vsel %vm937, %v2046, %v1623
  %v2063 = vsel %vm937, %v2047, %v1625
  %v2064 = vsel %vm937, %v2048, %v1627
  %v2065 = vsel %vm937, %v2049, %v1629
  %v2066 = vsel %vm937, %v2050, %v1631
  %v2067 = vsel %vm937, %v2051, %v1633
  %v2068 = vsel %vm937, %v2052, %v1635
  %v2069 = vsel %vm937, %v2053, %v1637
  %v2070 = vsel %vm971, %v2054, %v1671
  %v2071 = vsel %vm971, %v2055, %v1673
  %v2072 = vsel %vm971, %v2056, %v1675
  %v2073 = vsel %vm971, %v2057, %v1677
  %v2074 = vsel %vm971, %v2058, %v1679
  %v2075 = vsel %vm971, %v2059, %v1681
  %v2076 = vsel %vm971, %v2060, %v1683
  %v2077 = vsel %vm971, %v2061, %v1685
  %v2078 = vsel %vm971, %v2062, %v1687
  %v2079 = vsel %vm971, %v2063, %v1689
  %v2080 = vsel %vm971, %v2064, %v1691
  %v2081 = vsel %vm971, %v2065, %v1693
  %v2082 = vsel %vm971, %v2066, %v1695
  %v2083 = vsel %vm971, %v2067, %v1697
  %v2084 = vsel %vm971, %v2068, %v1699
  %v2085 = vsel %vm971, %v2069, %v1701
  %v2086 = vsel %vm1005, %v2070, %v1735
  %v2087 = vsel %vm1005, %v2071, %v1737
  %v2088 = vsel %vm1005, %v2072, %v1739
  %v2089 = vsel %vm1005, %v2073, %v1741
  %v2090 = vsel %vm1005, %v2074, %v1743
  %v2091 = vsel %vm1005, %v2075, %v1745
  %v2092 = vsel %vm1005, %v2076, %v1747
  %v2093 = vsel %vm1005, %v2077, %v1749
  %v2094 = vsel %vm1005, %v2078, %v1751
  %v2095 = vsel %vm1005, %v2079, %v1753
  %v2096 = vsel %vm1005, %v2080, %v1755
  %v2097 = vsel %vm1005, %v2081, %v1757
  %v2098 = vsel %vm1005, %v2082, %v1759
  %v2099 = vsel %vm1005, %v2083, %v1761
  %v2100 = vsel %vm1005, %v2084, %v1763
  %v2101 = vsel %vm1005, %v2085, %v1765
  %vm2102 = vcmask 326656
  %v2103 = vsel %vm2102, %v2086, %v1799
  %v2104 = vsel %vm2102, %v2087, %v1801
  %v2105 = vsel %vm2102, %v2088, %v1803
  %v2106 = vsel %vm2102, %v2089, %v1805
  %v2107 = vsel %vm2102, %v2090, %v1807
  %v2108 = vsel %vm2102, %v2091, %v1809
  %v2109 = vsel %vm2102, %v2092, %v1811
  %v2110 = vsel %vm2102, %v2093, %v1813
  %v2111 = vsel %vm2102, %v2094, %v1815
  %v2112 = vsel %vm2102, %v2095, %v1817
  %v2113 = vsel %vm2102, %v2096, %v1819
  %v2114 = vsel %vm2102, %v2097, %v1821
  %v2115 = vsel %vm2102, %v2098, %v1823
  %v2116 = vsel %vm2102, %v2099, %v1825
  %v2117 = vsel %vm2102, %v2100, %v1827
  %v2118 = vsel %vm2102, %v2101, %v1829
  %vm2119 = vcmask 392192
  %v2120 = vsel %vm2119, %v2103, %v1863
  %v2121 = vsel %vm2119, %v2104, %v1865
  %v2122 = vsel %vm2119, %v2105, %v1867
  %v2123 = vsel %vm2119, %v2106, %v1869
  %v2124 = vsel %vm2119, %v2107, %v1871
  %v2125 = vsel %vm2119, %v2108, %v1873
  %v2126 = vsel %vm2119, %v2109, %v1875
  %v2127 = vsel %vm2119, %v2110, %v1877
  %v2128 = vsel %vm2119, %v2111, %v1879
  %v2129 = vsel %vm2119, %v2112, %v1881
  %v2130 = vsel %vm2119, %v2113, %v1883
  %v2131 = vsel %vm2119, %v2114, %v1885
  %v2132 = vsel %vm2119, %v2115, %v1887
  %v2133 = vsel %vm2119, %v2116, %v1889
  %v2134 = vsel %vm2119, %v2117, %v1891
  %v2135 = vsel %vm2119, %v2118, %v1893
  %vm2136 = vcmask 457728
  %v2137 = vsel %vm2136, %v2120, %v1927
  %v2138 = vsel %vm2136, %v2121, %v1929
  %v2139 = vsel %vm2136, %v2122, %v1931
  %v2140 = vsel %vm2136, %v2123, %v1933
  %v2141 = vsel %vm2136, %v2124, %v1935
  %v2142 = vsel %vm2136, %v2125, %v1937
  %v2143 = vsel %vm2136, %v2126, %v1939
  %v2144 = vsel %vm2136, %v2127, %v1941
  %v2145 = vsel %vm2136, %v2128, %v1943
  %v2146 = vsel %vm2136, %v2129, %v1945
  %v2147 = vsel %vm2136, %v2130, %v1947
  %v2148 = vsel %vm2136, %v2131, %v1949
  %v2149 = vsel %vm2136, %v2132, %v1951
  %v2150 = vsel %vm2136, %v2133, %v1953
  %v2151 = vsel %vm2136, %v2134, %v1955
  %v2152 = vsel %vm2136, %v2135, %v1957
  %vm2153 = vcmask 523264
  %v2154 = vsel %vm2153, %v2137, %v1991
  %v2155 = vsel %vm2153, %v2138, %v1993
  %v2156 = vsel %vm2153, %v2139, %v1995
  %v2157 = vsel %vm2153, %v2140, %v1997
  %v2158 = vsel %vm2153, %v2141, %v1999
  %v2159 = vsel %vm2153, %v2142, %v2001
  %v2160 = vsel %vm2153, %v2143, %v2003
  %v2161 = vsel %vm2153, %v2144, %v2005
  %v2162 = vsel %vm2153, %v2145, %v2007
  %v2163 = vsel %vm2153, %v2146, %v2009
  %v2164 = vsel %vm2153, %v2147, %v2011
  %v2165 = vsel %vm2153, %v2148, %v2013
  %v2166 = vsel %vm2153, %v2149, %v2015
  %v2167 = vsel %vm2153, %v2150, %v2017
  %v2168 = vsel %vm2153, %v2151, %v2019
  %v2169 = vsel %vm2153, %v2152, %v2021
  %vm2170 = vcmask 588800
  %v2172 = vsel %vm2170, %v2154, 0
  %v2175 = vsel %vm2170, %v2155, 0
  %v2178 = vsel %vm2170, %v2156, 0
  %v2181 = vsel %vm2170, %v2157, 0
  %v2184 = vsel %vm2170, %v2158, 0
  %v2187 = vsel %vm2170, %v2159, 0
  %v2190 = vsel %vm2170, %v2160, 0
  %v2193 = vsel %vm2170, %v2161, 0
  %v2196 = vsel %vm2170, %v2162, 0
  %v2199 = vsel %vm2170, %v2163, 0
  %v2202 = vsel %vm2170, %v2164, 0
  %v2205 = vsel %vm2170, %v2165, 0
  %v2208 = vsel %vm2170, %v2166, 0
  %v2211 = vsel %vm2170, %v2167, 0
  %v2214 = vsel %vm2170, %v2168, 0
  %v2217 = vsel %vm2170, %v2169, 0
  %2219 = vmatpush.msra.mxu0 0.0
  %2220 = vmatpush.msra.mxu0 0.0
  %2221 = vmatpush.msra.mxu0 0.0
  %2222 = vmatpush.msra.mxu0 0.0
  %2223 = vmatpush.msra.mxu0 0.0
  %2224 = vmatpush.msra.mxu0 0.0
  %2225 = vmatpush.msra.mxu0 0.0
  %2226 = vmatpush.msra.mxu0 %v1310
  %2227 = vmatpush.msra.mxu0 %v1309
  %2228 = vmatpush.msra.mxu0 %v1308
  %2229 = vmatpush.msra.mxu0 %v1307
  %2230 = vmatpush.msra.mxu0 %v1306
  %2231 = vmatpush.msra.mxu0 %v1305
  %2232 = vmatpush.msra.mxu0 %v1304
  %2233 = vmatpush.msra.mxu0 %v1303
  %2234 = vmatpush.msra.mxu0 %v1302
  %2235 = vmatmul.f32.gmra.mxu0 %v2172
  %v2236 = vpop.f32.mrf.mxu0
  %v2237 = vadd.f32 0.0, %v2236
  %2238 = vmatmul.f32.gmra.mxu0 %v2175
  %v2239 = vpop.f32.mrf.mxu0
  %v2240 = vadd.f32 0.0, %v2239
  %2241 = vmatmul.f32.gmra.mxu0 %v2178
  %v2242 = vpop.f32.mrf.mxu0
  %v2243 = vadd.f32 0.0, %v2242
  %2244 = vmatmul.f32.gmra.mxu0 %v2181
  %v2245 = vpop.f32.mrf.mxu0
  %v2246 = vadd.f32 0.0, %v2245
  %2247 = vmatmul.f32.gmra.mxu0 %v2184
  %v2248 = vpop.f32.mrf.mxu0
  %v2249 = vadd.f32 0.0, %v2248
  %2250 = vmatmul.f32.gmra.mxu0 %v2187
  %v2251 = vpop.f32.mrf.mxu0
  %v2252 = vadd.f32 0.0, %v2251
  %2253 = vmatmul.f32.gmra.mxu0 %v2190
  %v2254 = vpop.f32.mrf.mxu0
  %v2255 = vadd.f32 0.0, %v2254
  %2256 = vmatmul.f32.gmra.mxu0 %v2193
  %v2257 = vpop.f32.mrf.mxu0
  %v2258 = vadd.f32 0.0, %v2257
  %2259 = vmatmul.f32.gmra.mxu0 %v2196
  %v2260 = vpop.f32.mrf.mxu0
  %v2261 = vadd.f32 0.0, %v2260
  %2262 = vmatmul.f32.gmra.mxu0 %v2199
  %v2263 = vpop.f32.mrf.mxu0
  %v2264 = vadd.f32 0.0, %v2263
  %2265 = vmatmul.f32.gmra.mxu0 %v2202
  %v2266 = vpop.f32.mrf.mxu0
  %v2267 = vadd.f32 0.0, %v2266
  %2268 = vmatmul.f32.gmra.mxu0 %v2205
  %v2269 = vpop.f32.mrf.mxu0
  %v2270 = vadd.f32 0.0, %v2269
  %2271 = vmatmul.f32.gmra.mxu0 %v2208
  %v2272 = vpop.f32.mrf.mxu0
  %v2273 = vadd.f32 0.0, %v2272
  %2274 = vmatmul.f32.gmra.mxu0 %v2211
  %v2275 = vpop.f32.mrf.mxu0
  %v2276 = vadd.f32 0.0, %v2275
  %2277 = vmatmul.f32.gmra.mxu0 %v2214
  %v2278 = vpop.f32.mrf.mxu0
  %v2279 = vadd.f32 0.0, %v2278
  %2280 = vmatmul.f32.gmra.mxu0 %v2217
  %v2281 = vpop.f32.mrf.mxu0
  %v2282 = vadd.f32 0.0, %v2281
  %2283 = vdwg.mxu0
  %v2284 = vsel %vm903, %v2237, 0.0
  %v2285 = vsel %vm903, %v2240, 0.0
  %v2286 = vadd.f32 %v2284, %v2285
  %v2287 = vsel %vm903, %v2243, 0.0
  %v2288 = vadd.f32 %v2286, %v2287
  %v2289 = vsel %vm903, %v2246, 0.0
  %v2290 = vadd.f32 %v2288, %v2289
  %v2291 = vsel %vm903, %v2249, 0.0
  %v2292 = vadd.f32 %v2290, %v2291
  %v2293 = vsel %vm903, %v2252, 0.0
  %v2294 = vadd.f32 %v2292, %v2293
  %v2295 = vsel %vm903, %v2255, 0.0
  %v2296 = vadd.f32 %v2294, %v2295
  %v2297 = vsel %vm903, %v2258, 0.0
  %v2298 = vadd.f32 %v2296, %v2297
  %v2299 = vsel %vm903, %v2261, 0.0
  %v2300 = vadd.f32 %v2298, %v2299
  %v2301 = vsel %vm903, %v2264, 0.0
  %v2302 = vadd.f32 %v2300, %v2301
  %v2303 = vsel %vm903, %v2267, 0.0
  %v2304 = vadd.f32 %v2302, %v2303
  %v2305 = vsel %vm903, %v2270, 0.0
  %v2306 = vadd.f32 %v2304, %v2305
  %v2307 = vsel %vm903, %v2273, 0.0
  %v2308 = vadd.f32 %v2306, %v2307
  %v2309 = vsel %vm903, %v2276, 0.0
  %v2310 = vadd.f32 %v2308, %v2309
  %v2311 = vsel %vm903, %v2279, 0.0
  %v2312 = vadd.f32 %v2310, %v2311
  %v2313 = vsel %vm903, %v2282, 0.0
  %v2314 = vadd.f32 %v2312, %v2313
  %v2315 = vrot.slane %v2314, 4
  %v2316 = vadd.f32 %v2314, %v2315
  %v2317 = vrot.slane %v2316, 2
  %v2318 = vadd.f32 %v2316, %v2317
  %v2319 = vrot.slane %v2318, 1
  %v2320 = vadd.f32 %v2318, %v2319
  %v2321 = vmul.f32 %v2320, 0.0078125
  %v2322 = vmul.f32 %v2237, %v2237
  %v2323 = vmul.f32 %v2240, %v2240
  %v2324 = vmul.f32 %v2243, %v2243
  %v2325 = vmul.f32 %v2246, %v2246
  %v2326 = vmul.f32 %v2249, %v2249
  %v2327 = vmul.f32 %v2252, %v2252
  %v2328 = vmul.f32 %v2255, %v2255
  %v2329 = vmul.f32 %v2258, %v2258
  %v2330 = vmul.f32 %v2261, %v2261
  %v2331 = vmul.f32 %v2264, %v2264
  %v2332 = vmul.f32 %v2267, %v2267
  %v2333 = vmul.f32 %v2270, %v2270
  %v2334 = vmul.f32 %v2273, %v2273
  %v2335 = vmul.f32 %v2276, %v2276
  %v2336 = vmul.f32 %v2279, %v2279
  %v2337 = vmul.f32 %v2282, %v2282
  %v2338 = vsel %vm903, %v2322, 0.0
  %v2339 = vsel %vm903, %v2323, 0.0
  %v2340 = vadd.f32 %v2338, %v2339
  %v2341 = vsel %vm903, %v2324, 0.0
  %v2342 = vadd.f32 %v2340, %v2341
  %v2343 = vsel %vm903, %v2325, 0.0
  %v2344 = vadd.f32 %v2342, %v2343
  %v2345 = vsel %vm903, %v2326, 0.0
  %v2346 = vadd.f32 %v2344, %v2345
  %v2347 = vsel %vm903, %v2327, 0.0
  %v2348 = vadd.f32 %v2346, %v2347
  %v2349 = vsel %vm903, %v2328, 0.0
  %v2350 = vadd.f32 %v2348, %v2349
  %v2351 = vsel %vm903, %v2329, 0.0
  %v2352 = vadd.f32 %v2350, %v2351
  %v2353 = vsel %vm903, %v2330, 0.0
  %v2354 = vadd.f32 %v2352, %v2353
  %v2355 = vsel %vm903, %v2331, 0.0
  %v2356 = vadd.f32 %v2354, %v2355
  %v2357 = vsel %vm903, %v2332, 0.0
  %v2358 = vadd.f32 %v2356, %v2357
  %v2359 = vsel %vm903, %v2333, 0.0
  %v2360 = vadd.f32 %v2358, %v2359
  %v2361 = vsel %vm903, %v2334, 0.0
  %v2362 = vadd.f32 %v2360, %v2361
  %v2363 = vsel %vm903, %v2335, 0.0
  %v2364 = vadd.f32 %v2362, %v2363
  %v2365 = vsel %vm903, %v2336, 0.0
  %v2366 = vadd.f32 %v2364, %v2365
  %v2367 = vsel %vm903, %v2337, 0.0
  %v2368 = vadd.f32 %v2366, %v2367
  %v2369 = vrot.slane %v2368, 4
  %v2370 = vadd.f32 %v2368, %v2369
  %v2371 = vrot.slane %v2370, 2
  %v2372 = vadd.f32 %v2370, %v2371
  %v2373 = vrot.slane %v2372, 1
  %v2374 = vadd.f32 %v2372, %v2373
  %v2375 = vmul.f32 %v2374, 0.0078125
  %v2376 = vmul.f32 %v2321, %v2321
  %v2377 = vsub.f32 %v2375, %v2376
  %v2378 = vadd.f32 %v2377, 1e-05
  %v2379 = vrsqrt.pop %v2378
  %v2380 = vmul.f32 %v2379, %v2378
  %v2381 = vmul.f32 %v2380, %v2379
  %v2382 = vmul.f32 0.5, %v2381
  %v2383 = vsub.f32 1.5, %v2382
  %v2384 = vmul.f32 %v2379, %v2383
  %vm2385 = vweird.f32 %v2378
  %vm2386 = vweird.f32 %v2379
  %vm2387 = vmor %vm2385, %vm2386
  %v2388 = vsel %vm2387, %v2379, %v2384
  %v2389 = vmul.f32 %v1311, %v2388
  %v2390 = vmul.f32 %v2321, %v2389
  %v2391 = vsub.f32 %v1312, %v2390
  %v2393 = vperm.slane %v2389, 0
  %v2395 = vmul.f32 %v2237, %v2393
  %v2396 = vmul.f32 %v2240, %v2393
  %v2397 = vmul.f32 %v2243, %v2393
  %v2398 = vmul.f32 %v2246, %v2393
  %v2399 = vmul.f32 %v2249, %v2393
  %v2400 = vmul.f32 %v2252, %v2393
  %v2401 = vmul.f32 %v2255, %v2393
  %v2402 = vmul.f32 %v2258, %v2393
  %v2403 = vmul.f32 %v2261, %v2393
  %v2404 = vmul.f32 %v2264, %v2393
  %v2405 = vmul.f32 %v2267, %v2393
  %v2406 = vmul.f32 %v2270, %v2393
  %v2407 = vmul.f32 %v2273, %v2393
  %v2408 = vmul.f32 %v2276, %v2393
  %v2409 = vmul.f32 %v2279, %v2393
  %v2410 = vmul.f32 %v2282, %v2393
  %v2412 = vperm.slane %v2391, 0
  %v2414 = vadd.f32 %v2395, %v2412
  %v2415 = vadd.f32 %v2396, %v2412
  %v2416 = vadd.f32 %v2397, %v2412
  %v2417 = vadd.f32 %v2398, %v2412
  %v2418 = vadd.f32 %v2399, %v2412
  %v2419 = vadd.f32 %v2400, %v2412
  %v2420 = vadd.f32 %v2401, %v2412
  %v2421 = vadd.f32 %v2402, %v2412
  %v2422 = vadd.f32 %v2403, %v2412
  %v2423 = vadd.f32 %v2404, %v2412
  %v2424 = vadd.f32 %v2405, %v2412
  %v2425 = vadd.f32 %v2406, %v2412
  %v2426 = vadd.f32 %v2407, %v2412
  %v2427 = vadd.f32 %v2408, %v2412
  %v2428 = vadd.f32 %v2409, %v2412
  %v2429 = vadd.f32 %v2410, %v2412
  %v2430 = vmax.f32 %v2414, 0.0
  %v2431 = vmax.f32 %v2415, 0.0
  %v2432 = vmax.f32 %v2416, 0.0
  %v2433 = vmax.f32 %v2417, 0.0
  %v2434 = vmax.f32 %v2418, 0.0
  %v2435 = vmax.f32 %v2419, 0.0
  %v2436 = vmax.f32 %v2420, 0.0
  %v2437 = vmax.f32 %v2421, 0.0
  %v2438 = vmax.f32 %v2422, 0.0
  %v2439 = vmax.f32 %v2423, 0.0
  %v2440 = vmax.f32 %v2424, 0.0
  %v2441 = vmax.f32 %v2425, 0.0
  %v2442 = vmax.f32 %v2426, 0.0
  %v2443 = vmax.f32 %v2427, 0.0
  %v2444 = vmax.f32 %v2428, 0.0
  %v2445 = vmax.f32 %v2429, 0.0
  %2446 = vst.msk [vmem:[%s7] sm:$0xff] %vm903, %v2430
  %2447 = vst.msk [vmem:[%s7 + $0x8] sm:$0xff] %vm903, %v2431
  %2448 = vst.msk [vmem:[%s7 + $0x10] sm:$0xff] %vm903, %v2432
  %2449 = vst.msk [vmem:[%s7 + $0x18] sm:$0xff] %vm903, %v2433
  %2450 = vst.msk [vmem:[%s7 + $0x20] sm:$0xff] %vm903, %v2434
  %2451 = vst.msk [vmem:[%s7 + $0x28] sm:$0xff] %vm903, %v2435
  %2452 = vst.msk [vmem:[%s7 + $0x30] sm:$0xff] %vm903, %v2436
  %2453 = vst.msk [vmem:[%s7 + $0x38] sm:$0xff] %vm903, %v2437
  %2454 = vst.msk [vmem:[%s7 + $0x40] sm:$0xff] %vm903, %v2438
  %2455 = vst.msk [vmem:[%s7 + $0x48] sm:$0xff] %vm903, %v2439
  %2456 = vst.msk [vmem:[%s7 + $0x50] sm:$0xff] %vm903, %v2440
  %2457 = vst.msk [vmem:[%s7 + $0x58] sm:$0xff] %vm903, %v2441
  %2458 = vst.msk [vmem:[%s7 + $0x60] sm:$0xff] %vm903, %v2442
  %2459 = vst.msk [vmem:[%s7 + $0x68] sm:$0xff] %vm903, %v2443
  %2460 = vst.msk [vmem:[%s7 + $0x70] sm:$0xff] %vm903, %v2444
  %2461 = vst.msk [vmem:[%s7 + $0x78] sm:$0xff] %vm903, %v2445
  // Predicated region
  $region30: #{down_forward.1} parent=0 // pred_check
    _
  $region31: #{down_forward.1} parent=0 // pred_check_branch
    %2463 = sbr.rel (0) target = $region33
  $region32: #{down_forward.1} parent=0 // pred_region
    _
  $region33: #{down_forward.1} parent=0 // pred_fallthru
    _
  // Predicated region
  $region34: #{down_forward.1} parent=0 // pred_check
    _
  $region35: #{down_forward.1} parent=0 // pred_check_branch
    %2465 = sbr.rel (0) target = $region37
  $region36: #{down_forward.1} parent=0 // pred_region
    _
  $region37: #{down_forward.1} parent=0 // pred_fallthru
    _

</llo_original>
